<compile_context>
chip_gen: v5e
topology: v5e:2x2
jax: 0.10.0
libtpu: 0.0.40
codegen_flags: <defaults>
</compile_context>

<pallas_src>
import functools
import math

import jax
import jax.numpy as jnp
from jax.experimental import pallas as pl
from jax.experimental.pallas import tpu as pltpu


# ----------------------------- model config ---------------------------------
IN_FEATURES = 2
EMB_SIZE = 128          # sinusoidal embedding width
HIDDEN_SIZE = 128
HIDDEN_LAYERS = 3
COORD_SCALE = 25.0      # PositionalEmbedding(..., scale=25.0) for coords
TIME_SCALE = 1.0
N_INPUTS = IN_FEATURES + 1                    # x0, x1, t
CONCAT_SIZE = EMB_SIZE * N_INPUTS             # 384
OUT_PAD = 128                                 # lane-dense padded output width

_C0 = math.sqrt(2.0 / math.pi)
_C1 = _C0 * 0.044715


# ------------------------------ kernel math ----------------------------------
def _gelu_tanh(z):
    # Folded tanh-poly GELU (max |err| ~1e-3): 7 VALU ops + 1 EUP tanh.
    # Used where pre-activations are wide (first layer).
    hz = 0.5 * z
    return hz + hz * jnp.tanh(z * (_C0 + _C1 * (z * z)))


def _gelu_sigmoid(z):
    # z*sigmoid(1.702 z) == 0.5 z (1 + tanh(0.851 z)): 4 VALU ops + 1 EUP tanh.
    # Used on the hidden layers whose pre-activations are small (|z| <~ 0.6),
    # where the approximation error is < 5e-3 (vs ~2e-2 peak near |z|~2).
    hz = 0.5 * z
    return hz + hz * jnp.tanh(0.851 * z)


def _diffusion_kernel(x_ref, t_ref, sf_ref, phase_ref,
                      w_in_ref, b_in_ref,
                      w_h_ref, b_h_ref,
                      w_out_ref, b_out_ref,
                      o_ref, *, n_coords, hidden_layers):
    phase = phase_ref[...]                                   # (1, 128)

    # Per-input sinusoidal embedding, one lane-aligned (tb,128) tile each:
    # [sin|cos](v*scale*freq) is built as a single sin() over a phase-shifted
    # argument (cos(a) == sin(a + pi/2)), avoiding 64-lane concatenates.
    cols = [x_ref[:, j:j + 1] for j in range(n_coords)] + [t_ref[...]]
    embs = [jnp.sin(c * sf_ref[j:j + 1, :] + phase) for j, c in enumerate(cols)]
    # 128-aligned lane concat (pure layout) -> single K=384 MXU contraction.
    emb = jnp.concatenate(embs, axis=-1).astype(jnp.bfloat16)        # (tb, 384)

    z = jnp.dot(emb, w_in_ref[...], preferred_element_type=jnp.float32)
    h = _gelu_tanh(z + b_in_ref[...])

    for i in range(hidden_layers):
        zi = jnp.dot(h.astype(jnp.bfloat16), w_h_ref[i],
                     preferred_element_type=jnp.float32) + b_h_ref[i]
        h = h + _gelu_sigmoid(zi)

    o_ref[...] = (jnp.dot(h.astype(jnp.bfloat16), w_out_ref[...],
                          preferred_element_type=jnp.float32)
                  + b_out_ref[...]).astype(o_ref.dtype)


# ------------------------------ wrapper ---------------------------------------
def _round_up(n, m):
    return ((n + m - 1) // m) * m


def _choose_tile(B, block_b):
    if B < block_b:
        return _round_up(B, 16)                 # bf16-friendly sublane multiple
    if B < 2 * block_b:
        # Guarantee >=2 grid steps so both v7x TensorCores get work.
        return max(16, _round_up(_round_up(B, 16) // 2, 16))
    return block_b


def low_dim_diffusion_forward(x, t, params, *, block_b=2048):
    """x: (B, in_features) f32, t: (B,) f32 -> (B, in_features) f32."""
    B = x.shape[0]
    w_in, b_in, w_h, b_h, w_out, b_out = params

    tb = _choose_tile(B, block_b)
    Bp = _round_up(B, tb)
    x_p = x.astype(jnp.float32)
    t_p = t.reshape(B, 1).astype(jnp.float32)
    if Bp != B:
        x_p = jnp.pad(x_p, ((0, Bp - B), (0, 0)))
        t_p = jnp.pad(t_p, ((0, Bp - B), (0, 0)))
    grid = (Bp // tb,)

    # Hoisted sinusoidal tables: per-input scaled freqs (3,128) and a sin->cos
    # phase row (1,128) (first half 0, second half pi/2).
    half = EMB_SIZE // 2
    freqs = jnp.exp((-math.log(10000.0) / (half - 1))
                    * jnp.arange(half, dtype=jnp.float32))
    freqs128 = jnp.concatenate([freqs, freqs])                       # (128,)
    scales = jnp.array([COORD_SCALE] * IN_FEATURES + [TIME_SCALE], jnp.float32)
    sf = scales[:, None] * freqs128[None, :]                         # (3, 128)
    phase = jnp.concatenate(
        [jnp.zeros((half,), jnp.float32),
         jnp.full((half,), 0.5 * math.pi, jnp.float32)]).reshape(1, EMB_SIZE)

    # Pad the output layer to 128 lanes for lane-dense stores (sliced below).
    w_out_p = jnp.zeros((HIDDEN_SIZE, OUT_PAD), jnp.float32).at[:, :IN_FEATURES].set(w_out)
    b_out_p = jnp.zeros((1, OUT_PAD), jnp.float32).at[:, :IN_FEATURES].set(b_out)

    # bf16 weights for the MXU (accumulation stays f32 inside the kernel).
    w_in_b = w_in.astype(jnp.bfloat16)
    w_h_b = w_h.astype(jnp.bfloat16)
    w_out_b = w_out_p.astype(jnp.bfloat16)

    kernel = functools.partial(
        _diffusion_kernel, n_coords=IN_FEATURES, hidden_layers=HIDDEN_LAYERS)

    batch_map = lambda i: (i, 0)
    const2 = lambda i: (0, 0)
    const3 = lambda i: (0, 0, 0)

    out = pl.pallas_call(
        kernel,
        grid=grid,
        out_shape=jax.ShapeDtypeStruct((Bp, OUT_PAD), jnp.bfloat16),
        in_specs=[
            pl.BlockSpec((tb, IN_FEATURES), batch_map),              # x
            pl.BlockSpec((tb, 1), batch_map),                        # t
            pl.BlockSpec((N_INPUTS, EMB_SIZE), const2),              # sf
            pl.BlockSpec((1, EMB_SIZE), const2),                     # phase
            pl.BlockSpec((CONCAT_SIZE, HIDDEN_SIZE), const2),        # w_in (bf16)
            pl.BlockSpec((1, HIDDEN_SIZE), const2),                  # b_in
            pl.BlockSpec((HIDDEN_LAYERS, HIDDEN_SIZE, HIDDEN_SIZE), const3),  # w_h
            pl.BlockSpec((HIDDEN_LAYERS, 1, HIDDEN_SIZE), const3),   # b_h
            pl.BlockSpec((HIDDEN_SIZE, OUT_PAD), const2),            # w_out (bf16)
            pl.BlockSpec((1, OUT_PAD), const2),                      # b_out
        ],
        out_specs=pl.BlockSpec((tb, OUT_PAD), batch_map),
        compiler_params=pltpu.CompilerParams(
            dimension_semantics=("parallel",),
            vmem_limit_bytes=32 * 1024 * 1024),
    )(x_p, t_p, sf, phase, w_in_b, b_in, w_h_b, b_h, w_out_b, b_out_p)

    return out[:B, :IN_FEATURES].astype(jnp.float32)


# ------------------------- deterministic parameters ---------------------------
def _linear_params(key, fan_in, fan_out):
    kw, kb = jax.random.split(key)
    bound = 1.0 / math.sqrt(fan_in)
    w = jax.random.uniform(kw, (fan_in, fan_out), jnp.float32, -bound, bound)
    b = jax.random.uniform(kb, (fan_out,), jnp.float32, -bound, bound)
    return w, b


def make_params(key):
    keys = jax.random.split(key, 2 + HIDDEN_LAYERS)
    w_in, b_in = _linear_params(keys[0], CONCAT_SIZE, HIDDEN_SIZE)
    hw, hb = [], []
    for i in range(HIDDEN_LAYERS):
        w, b = _linear_params(keys[1 + i], HIDDEN_SIZE, HIDDEN_SIZE)
        hw.append(w)
        hb.append(b.reshape(1, HIDDEN_SIZE))
    w_out, b_out = _linear_params(keys[-1], HIDDEN_SIZE, IN_FEATURES)
    return (w_in, b_in.reshape(1, HIDDEN_SIZE),
            jnp.stack(hw), jnp.stack(hb),
            w_out, b_out.reshape(1, IN_FEATURES))


# ----------------------------- pure-JAX reference -----------------------------
def _sinusoidal_ref(v, scale, size):
    half = size // 2
    freqs = jnp.exp((-math.log(10000.0) / (half - 1))
                    * jnp.arange(half, dtype=jnp.float32))
    arg = (v * scale)[:, None] * freqs[None, :]
    return jnp.concatenate([jnp.sin(arg), jnp.cos(arg)], axis=-1)


def forward_ref(x, t, params):
    w_in, b_in, w_h, b_h, w_out, b_out = params
    gelu = lambda z: 0.5 * z * (1.0 + jax.scipy.special.erf(z / math.sqrt(2.0)))
    dot = functools.partial(jnp.dot, precision=jax.lax.Precision.HIGHEST)
    embs = [_sinusoidal_ref(x[:, i], COORD_SCALE, EMB_SIZE) for i in range(IN_FEATURES)]
    embs.append(_sinusoidal_ref(t, TIME_SCALE, EMB_SIZE))
    h = gelu(dot(jnp.concatenate(embs, axis=-1), w_in) + b_in)
    for i in range(HIDDEN_LAYERS):
        h = h + gelu(dot(h, w_h[i]) + b_h[i])
    return dot(h, w_out) + b_out


# ----------------------------------- main --------------------------------------
if __name__ == "__main__":
    key = jax.random.PRNGKey(0)
    kx, kt, kp = jax.random.split(key, 3)
    params = make_params(kp)

    # Small single-block case (default block_b path).
    B = 8
    x = jax.random.normal(kx, (B, IN_FEATURES), jnp.float32)
    t = jax.random.uniform(kt, (B,), jnp.float32, 0.0, 1.0)
    out = jax.block_until_ready(low_dim_diffusion_forward(x, t, params))
    ref = forward_ref(x, t, params)
    assert out.shape == (B, IN_FEATURES), out.shape
    assert jnp.allclose(out, ref, rtol=2e-2, atol=2e-2), (out, ref)

    # Multi-block case exercising the batch grid + padding path.
    B2 = 300
    x2 = jax.random.normal(kx, (B2, IN_FEATURES), jnp.float32)
    t2 = jax.random.uniform(kt, (B2,), jnp.float32, 0.0, 1.0)
    out2 = jax.block_until_ready(
        low_dim_diffusion_forward(x2, t2, params, block_b=128))
    ref2 = forward_ref(x2, t2, params)
    assert out2.shape == (B2, IN_FEATURES), out2.shape
    assert jnp.allclose(out2, ref2, rtol=2e-2, atol=2e-2)

    print("KERNEL_OK")
</pallas_src>

<mosaic_0001>
module attributes {stable_mosaic.version = 11 : i64} {
  func.func @_diffusion_kernel(%arg0: i32, %arg1: memref<16x2xf32, #tpu.memory_space<vmem>>, %arg2: memref<16x1xf32, #tpu.memory_space<vmem>>, %arg3: memref<3x128xf32, #tpu.memory_space<vmem>>, %arg4: memref<1x128xf32, #tpu.memory_space<vmem>>, %arg5: memref<384x128xbf16, #tpu.memory_space<vmem>>, %arg6: memref<1x128xf32, #tpu.memory_space<vmem>>, %arg7: memref<3x128x128xbf16, #tpu.memory_space<vmem>>, %arg8: memref<3x1x128xf32, #tpu.memory_space<vmem>>, %arg9: memref<128x128xbf16, #tpu.memory_space<vmem>>, %arg10: memref<1x128xf32, #tpu.memory_space<vmem>>, %arg11: memref<16x128xbf16, #tpu.memory_space<vmem>>) attributes {dimension_semantics = [#tpu.dimension_semantics<parallel>], iteration_bounds = array<i64: 1>, scalar_prefetch = 0 : i64, scratch_operands = 0 : i64, tpu.core_type = #tpu.core_type<tc>, window_params = [{transform_indices = @transform_0, window_bounds = array<i64: 16, 2>}, {transform_indices = @transform_1, window_bounds = array<i64: 16, 1>}, {pipeline_mode = #tpu.pipeline_mode<synchronous>, transform_indices = @transform_2, window_bounds = array<i64: 3, 128>}, {pipeline_mode = #tpu.pipeline_mode<synchronous>, transform_indices = @transform_3, window_bounds = array<i64: 1, 128>}, {pipeline_mode = #tpu.pipeline_mode<synchronous>, transform_indices = @transform_4, window_bounds = array<i64: 384, 128>}, {pipeline_mode = #tpu.pipeline_mode<synchronous>, transform_indices = @transform_5, window_bounds = array<i64: 1, 128>}, {pipeline_mode = #tpu.pipeline_mode<synchronous>, transform_indices = @transform_6, window_bounds = array<i64: 3, 128, 128>}, {pipeline_mode = #tpu.pipeline_mode<synchronous>, transform_indices = @transform_7, window_bounds = array<i64: 3, 1, 128>}, {pipeline_mode = #tpu.pipeline_mode<synchronous>, transform_indices = @transform_8, window_bounds = array<i64: 128, 128>}, {pipeline_mode = #tpu.pipeline_mode<synchronous>, transform_indices = @transform_9, window_bounds = array<i64: 1, 128>}, {transform_indices = @transform_10, window_bounds = array<i64: 16, 128>}]} {
    %c0 = arith.constant 0 : index
    %c0_0 = arith.constant 0 : index
    %0 = vector.load %arg4[%c0, %c0_0] : memref<1x128xf32, #tpu.memory_space<vmem>>, vector<1x128xf32>
    %c0_1 = arith.constant 0 : index
    %c0_2 = arith.constant 0 : index
    %1 = vector.load %arg1[%c0_1, %c0_2] : memref<16x2xf32, #tpu.memory_space<vmem>>, vector<16x1xf32>
    %c0_3 = arith.constant 0 : index
    %c1 = arith.constant 1 : index
    %2 = vector.load %arg1[%c0_3, %c1] : memref<16x2xf32, #tpu.memory_space<vmem>>, vector<16x1xf32>
    %c0_4 = arith.constant 0 : index
    %c0_5 = arith.constant 0 : index
    %3 = vector.load %arg2[%c0_4, %c0_5] : memref<16x1xf32, #tpu.memory_space<vmem>>, vector<16x1xf32>
    %c0_6 = arith.constant 0 : index
    %c0_7 = arith.constant 0 : index
    %4 = vector.load %arg3[%c0_6, %c0_7] : memref<3x128xf32, #tpu.memory_space<vmem>>, vector<1x128xf32>
    %5 = vector.broadcast %1 : vector<16x1xf32> to vector<16x128xf32>
    %6 = vector.broadcast %4 : vector<1x128xf32> to vector<16x128xf32>
    %7 = arith.mulf %5, %6 : vector<16x128xf32>
    %8 = vector.broadcast %0 : vector<1x128xf32> to vector<16x128xf32>
    %9 = arith.addf %7, %8 : vector<16x128xf32>
    %10 = math.sin %9 : vector<16x128xf32>
    %c1_8 = arith.constant 1 : index
    %c0_9 = arith.constant 0 : index
    %11 = vector.load %arg3[%c1_8, %c0_9] : memref<3x128xf32, #tpu.memory_space<vmem>>, vector<1x128xf32>
    %12 = vector.broadcast %2 : vector<16x1xf32> to vector<16x128xf32>
    %13 = vector.broadcast %11 : vector<1x128xf32> to vector<16x128xf32>
    %14 = arith.mulf %12, %13 : vector<16x128xf32>
    %15 = vector.broadcast %0 : vector<1x128xf32> to vector<16x128xf32>
    %16 = arith.addf %14, %15 : vector<16x128xf32>
    %17 = math.sin %16 : vector<16x128xf32>
    %c2 = arith.constant 2 : index
    %c0_10 = arith.constant 0 : index
    %18 = vector.load %arg3[%c2, %c0_10] : memref<3x128xf32, #tpu.memory_space<vmem>>, vector<1x128xf32>
    %19 = vector.broadcast %3 : vector<16x1xf32> to vector<16x128xf32>
    %20 = vector.broadcast %18 : vector<1x128xf32> to vector<16x128xf32>
    %21 = arith.mulf %19, %20 : vector<16x128xf32>
    %22 = vector.broadcast %0 : vector<1x128xf32> to vector<16x128xf32>
    %23 = arith.addf %21, %22 : vector<16x128xf32>
    %24 = math.sin %23 : vector<16x128xf32>
    %25 = tpu.concatenate %10, %17, %24 in 1 : vector<16x128xf32>, vector<16x128xf32>, vector<16x128xf32> -> vector<16x384xf32>
    %26 = arith.truncf %25 : vector<16x384xf32> to vector<16x384xbf16>
    %c0_11 = arith.constant 0 : index
    %c0_12 = arith.constant 0 : index
    %27 = vector.load %arg5[%c0_11, %c0_12] : memref<384x128xbf16, #tpu.memory_space<vmem>>, vector<384x128xbf16>
    %cst = arith.constant dense<0.000000e+00> : vector<16x128xf32>
    %28 = tpu.matmul %26, %27, %cst {dimension_numbers = #tpu.dot_dimension_numbers<[1], [0], [0], [1], [0, 0, 1, 1], [], []>} : vector<16x384xbf16>, vector<384x128xbf16>, vector<16x128xf32> -> vector<16x128xf32>
    %c0_13 = arith.constant 0 : index
    %c0_14 = arith.constant 0 : index
    %29 = vector.load %arg6[%c0_13, %c0_14] : memref<1x128xf32, #tpu.memory_space<vmem>>, vector<1x128xf32>
    %30 = vector.broadcast %29 : vector<1x128xf32> to vector<16x128xf32>
    %31 = arith.addf %28, %30 : vector<16x128xf32>
    %cst_15 = arith.constant 5.000000e-01 : f32
    %32 = vector.broadcast %cst_15 : f32 to vector<16x128xf32>
    %33 = arith.mulf %32, %31 : vector<16x128xf32>
    %34 = arith.mulf %31, %31 : vector<16x128xf32>
    %cst_16 = arith.constant 0.0356774069 : f32
    %35 = vector.broadcast %cst_16 : f32 to vector<16x128xf32>
    %36 = arith.mulf %35, %34 : vector<16x128xf32>
    %cst_17 = arith.constant 0.797884583 : f32
    %37 = vector.broadcast %cst_17 : f32 to vector<16x128xf32>
    %38 = arith.addf %37, %36 : vector<16x128xf32>
    %39 = arith.mulf %31, %38 : vector<16x128xf32>
    %40 = math.tanh %39 : vector<16x128xf32>
    %41 = arith.mulf %33, %40 : vector<16x128xf32>
    %42 = arith.addf %33, %41 : vector<16x128xf32>
    %43 = arith.truncf %42 : vector<16x128xf32> to vector<16x128xbf16>
    %c0_18 = arith.constant 0 : index
    %c0_19 = arith.constant 0 : index
    %c0_20 = arith.constant 0 : index
    %44 = vector.load %arg7[%c0_18, %c0_19, %c0_20] : memref<3x128x128xbf16, #tpu.memory_space<vmem>>, vector<1x128x128xbf16>
    %45 = vector.shape_cast %44 : vector<1x128x128xbf16> to vector<128x128xbf16>
    %cst_21 = arith.constant dense<0.000000e+00> : vector<16x128xf32>
    %46 = tpu.matmul %43, %45, %cst_21 {dimension_numbers = #tpu.dot_dimension_numbers<[1], [0], [0], [1], [0, 0, 1, 1], [], []>} : vector<16x128xbf16>, vector<128x128xbf16>, vector<16x128xf32> -> vector<16x128xf32>
    %c0_22 = arith.constant 0 : index
    %c0_23 = arith.constant 0 : index
    %c0_24 = arith.constant 0 : index
    %47 = vector.load %arg8[%c0_22, %c0_23, %c0_24] : memref<3x1x128xf32, #tpu.memory_space<vmem>>, vector<1x1x128xf32>
    %48 = vector.shape_cast %47 : vector<1x1x128xf32> to vector<1x128xf32>
    %49 = vector.broadcast %48 : vector<1x128xf32> to vector<16x128xf32>
    %50 = arith.addf %46, %49 : vector<16x128xf32>
    %cst_25 = arith.constant 5.000000e-01 : f32
    %51 = vector.broadcast %cst_25 : f32 to vector<16x128xf32>
    %52 = arith.mulf %51, %50 : vector<16x128xf32>
    %cst_26 = arith.constant 8.510000e-01 : f32
    %53 = vector.broadcast %cst_26 : f32 to vector<16x128xf32>
    %54 = arith.mulf %53, %50 : vector<16x128xf32>
    %55 = math.tanh %54 : vector<16x128xf32>
    %56 = arith.mulf %52, %55 : vector<16x128xf32>
    %57 = arith.addf %52, %56 : vector<16x128xf32>
    %58 = arith.addf %42, %57 : vector<16x128xf32>
    %59 = arith.truncf %58 : vector<16x128xf32> to vector<16x128xbf16>
    %c1_27 = arith.constant 1 : index
    %c0_28 = arith.constant 0 : index
    %c0_29 = arith.constant 0 : index
    %60 = vector.load %arg7[%c1_27, %c0_28, %c0_29] : memref<3x128x128xbf16, #tpu.memory_space<vmem>>, vector<1x128x128xbf16>
    %61 = vector.shape_cast %60 : vector<1x128x128xbf16> to vector<128x128xbf16>
    %cst_30 = arith.constant dense<0.000000e+00> : vector<16x128xf32>
    %62 = tpu.matmul %59, %61, %cst_30 {dimension_numbers = #tpu.dot_dimension_numbers<[1], [0], [0], [1], [0, 0, 1, 1], [], []>} : vector<16x128xbf16>, vector<128x128xbf16>, vector<16x128xf32> -> vector<16x128xf32>
    %c1_31 = arith.constant 1 : index
    %c0_32 = arith.constant 0 : index
    %c0_33 = arith.constant 0 : index
    %63 = vector.load %arg8[%c1_31, %c0_32, %c0_33] : memref<3x1x128xf32, #tpu.memory_space<vmem>>, vector<1x1x128xf32>
    %64 = vector.shape_cast %63 : vector<1x1x128xf32> to vector<1x128xf32>
    %65 = vector.broadcast %64 : vector<1x128xf32> to vector<16x128xf32>
    %66 = arith.addf %62, %65 : vector<16x128xf32>
    %cst_34 = arith.constant 5.000000e-01 : f32
    %67 = vector.broadcast %cst_34 : f32 to vector<16x128xf32>
    %68 = arith.mulf %67, %66 : vector<16x128xf32>
    %cst_35 = arith.constant 8.510000e-01 : f32
    %69 = vector.broadcast %cst_35 : f32 to vector<16x128xf32>
    %70 = arith.mulf %69, %66 : vector<16x128xf32>
    %71 = math.tanh %70 : vector<16x128xf32>
    %72 = arith.mulf %68, %71 : vector<16x128xf32>
    %73 = arith.addf %68, %72 : vector<16x128xf32>
    %74 = arith.addf %58, %73 : vector<16x128xf32>
    %75 = arith.truncf %74 : vector<16x128xf32> to vector<16x128xbf16>
    %c2_36 = arith.constant 2 : index
    %c0_37 = arith.constant 0 : index
    %c0_38 = arith.constant 0 : index
    %76 = vector.load %arg7[%c2_36, %c0_37, %c0_38] : memref<3x128x128xbf16, #tpu.memory_space<vmem>>, vector<1x128x128xbf16>
    %77 = vector.shape_cast %76 : vector<1x128x128xbf16> to vector<128x128xbf16>
    %cst_39 = arith.constant dense<0.000000e+00> : vector<16x128xf32>
    %78 = tpu.matmul %75, %77, %cst_39 {dimension_numbers = #tpu.dot_dimension_numbers<[1], [0], [0], [1], [0, 0, 1, 1], [], []>} : vector<16x128xbf16>, vector<128x128xbf16>, vector<16x128xf32> -> vector<16x128xf32>
    %c2_40 = arith.constant 2 : index
    %c0_41 = arith.constant 0 : index
    %c0_42 = arith.constant 0 : index
    %79 = vector.load %arg8[%c2_40, %c0_41, %c0_42] : memref<3x1x128xf32, #tpu.memory_space<vmem>>, vector<1x1x128xf32>
    %80 = vector.shape_cast %79 : vector<1x1x128xf32> to vector<1x128xf32>
    %81 = vector.broadcast %80 : vector<1x128xf32> to vector<16x128xf32>
    %82 = arith.addf %78, %81 : vector<16x128xf32>
    %cst_43 = arith.constant 5.000000e-01 : f32
    %83 = vector.broadcast %cst_43 : f32 to vector<16x128xf32>
    %84 = arith.mulf %83, %82 : vector<16x128xf32>
    %cst_44 = arith.constant 8.510000e-01 : f32
    %85 = vector.broadcast %cst_44 : f32 to vector<16x128xf32>
    %86 = arith.mulf %85, %82 : vector<16x128xf32>
    %87 = math.tanh %86 : vector<16x128xf32>
    %88 = arith.mulf %84, %87 : vector<16x128xf32>
    %89 = arith.addf %84, %88 : vector<16x128xf32>
    %90 = arith.addf %74, %89 : vector<16x128xf32>
    %91 = arith.truncf %90 : vector<16x128xf32> to vector<16x128xbf16>
    %c0_45 = arith.constant 0 : index
    %c0_46 = arith.constant 0 : index
    %92 = vector.load %arg9[%c0_45, %c0_46] : memref<128x128xbf16, #tpu.memory_space<vmem>>, vector<128x128xbf16>
    %cst_47 = arith.constant dense<0.000000e+00> : vector<16x128xf32>
    %93 = tpu.matmul %91, %92, %cst_47 {dimension_numbers = #tpu.dot_dimension_numbers<[1], [0], [0], [1], [0, 0, 1, 1], [], []>} : vector<16x128xbf16>, vector<128x128xbf16>, vector<16x128xf32> -> vector<16x128xf32>
    %c0_48 = arith.constant 0 : index
    %c0_49 = arith.constant 0 : index
    %94 = vector.load %arg10[%c0_48, %c0_49] : memref<1x128xf32, #tpu.memory_space<vmem>>, vector<1x128xf32>
    %95 = vector.broadcast %94 : vector<1x128xf32> to vector<16x128xf32>
    %96 = arith.addf %93, %95 : vector<16x128xf32>
    %97 = arith.truncf %96 : vector<16x128xf32> to vector<16x128xbf16>
    %c0_50 = arith.constant 0 : index
    %c0_51 = arith.constant 0 : index
    %98 = vector.load %arg11[%c0_50, %c0_51] : memref<16x128xbf16, #tpu.memory_space<vmem>>, vector<16x128xbf16>
    tpu.vector_store %arg11[%c0_50, %c0_51], %97 {strides = array<i32>} : memref<16x128xbf16, #tpu.memory_space<vmem>>, vector<16x128xbf16>,
    return
  }
  func.func @transform_0(%arg0: i32) -> (i32, i32) {
    %c0_i32 = arith.constant 0 : i32
    %c0_i32_0 = arith.constant 0 : i32
    return %arg0, %c0_i32 : i32, i32
  }
  func.func @transform_1(%arg0: i32) -> (i32, i32) {
    %c0_i32 = arith.constant 0 : i32
    %c0_i32_0 = arith.constant 0 : i32
    return %arg0, %c0_i32 : i32, i32
  }
  func.func @transform_2(%arg0: i32) -> (i32, i32) {
    %c0_i32 = arith.constant 0 : i32
    %c0_i32_0 = arith.constant 0 : i32
    %c0_i32_1 = arith.constant 0 : i32
    return %c0_i32, %c0_i32_0 : i32, i32
  }
  func.func @transform_3(%arg0: i32) -> (i32, i32) {
    %c0_i32 = arith.constant 0 : i32
    %c0_i32_0 = arith.constant 0 : i32
    %c0_i32_1 = arith.constant 0 : i32
    return %c0_i32, %c0_i32_0 : i32, i32
  }
  func.func @transform_4(%arg0: i32) -> (i32, i32) {
    %c0_i32 = arith.constant 0 : i32
    %c0_i32_0 = arith.constant 0 : i32
    %c0_i32_1 = arith.constant 0 : i32
    return %c0_i32, %c0_i32_0 : i32, i32
  }
  func.func @transform_5(%arg0: i32) -> (i32, i32) {
    %c0_i32 = arith.constant 0 : i32
    %c0_i32_0 = arith.constant 0 : i32
    %c0_i32_1 = arith.constant 0 : i32
    return %c0_i32, %c0_i32_0 : i32, i32
  }
  func.func @transform_6(%arg0: i32) -> (i32, i32, i32) {
    %c0_i32 = arith.constant 0 : i32
    %c0_i32_0 = arith.constant 0 : i32
    %c0_i32_1 = arith.constant 0 : i32
    %c0_i32_2 = arith.constant 0 : i32
    return %c0_i32, %c0_i32_0, %c0_i32_1 : i32, i32, i32
  }
  func.func @transform_7(%arg0: i32) -> (i32, i32, i32) {
    %c0_i32 = arith.constant 0 : i32
    %c0_i32_0 = arith.constant 0 : i32
    %c0_i32_1 = arith.constant 0 : i32
    %c0_i32_2 = arith.constant 0 : i32
    return %c0_i32, %c0_i32_0, %c0_i32_1 : i32, i32, i32
  }
  func.func @transform_8(%arg0: i32) -> (i32, i32) {
    %c0_i32 = arith.constant 0 : i32
    %c0_i32_0 = arith.constant 0 : i32
    %c0_i32_1 = arith.constant 0 : i32
    return %c0_i32, %c0_i32_0 : i32, i32
  }
  func.func @transform_9(%arg0: i32) -> (i32, i32) {
    %c0_i32 = arith.constant 0 : i32
    %c0_i32_0 = arith.constant 0 : i32
    %c0_i32_1 = arith.constant 0 : i32
    return %c0_i32, %c0_i32_0 : i32, i32
  }
  func.func @transform_10(%arg0: i32) -> (i32, i32) {
    %c0_i32 = arith.constant 0 : i32
    %c0_i32_0 = arith.constant 0 : i32
    return %arg0, %c0_i32 : i32, i32
  }
}

</mosaic_0001>

<llo_original>
// kernel: tpu_custom_call.1
$region0: #{tpu_custom_call.1}
  #allocation0 [shape = 'u32[]', space=smem, size = 0x4, offset = 0x4, fixed_abs, tag = 'smem constant byte address 0x4 - core index']
  #allocation1 [shape = 'u32[72,128]{1,0:T(1,128)}', space=vmem, size = 0x9000, scoped, tag = 'internal scratch']
  %s0 = inlined_call_operand.vmem [shape: f32[16,2], index: 0, kind: input, shape index: {}]
  %s1 = inlined_call_operand.vmem [shape: f32[16,1], index: 1, kind: input, shape index: {}]
  %s2 = inlined_call_operand.vmem [shape: f32[3,128], index: 2, kind: input, shape index: {}]
  %s3 = inlined_call_operand.vmem [shape: f32[1,128], index: 3, kind: input, shape index: {}]
  %s4 = inlined_call_operand.hbm [shape: bf16[384,128], index: 4, kind: input, shape index: {}]
  %s5 = inlined_call_operand.vmem [shape: f32[1,128], index: 5, kind: input, shape index: {}]
  %s6 = inlined_call_operand.hbm [shape: bf16[3,128,128], index: 6, kind: input, shape index: {}]
  %s7 = inlined_call_operand.vmem [shape: f32[3,1,128], index: 7, kind: input, shape index: {}]
  %s8 = inlined_call_operand.hbm [shape: bf16[128,128], index: 8, kind: input, shape index: {}]
  %s9 = inlined_call_operand.vmem [shape: f32[1,128], index: 9, kind: input, shape index: {}]
  %s10 = inlined_call_operand.hbm [shape: bf16[16,128], index: 10, kind: output, shape index: {}]
  %s11 = sld [smem:[#allocation0]]
  $region62: #{tpu_custom_call.1} parent=0
    _
  %s13 = ssub.s32 1, %s11
  %s14 = scalar_select 0, %s13, %s11
  $region1: #{tpu_custom_call.1} parent=0
    #allocation2 [shape = 'u8[98304]{0}', space=vmem, size = 0x18000, scoped, tag = 'input window, operand 4, single buffered']
    #allocation3 [shape = 's32[1]{0}', space=sflag, size = 0x4, scoped, tag = 'scoped memory for tpu_custom_call.1']
    #allocation4 [shape = 's32[1]{0}', space=sflag, size = 0x4, scoped, tag = 'scoped memory for tpu_custom_call.1']
    #allocation5 [shape = 'u8[98304]{0}', space=vmem, size = 0x18000, scoped, tag = 'input window, operand 6, single buffered']
    #allocation6 [shape = 's32[1]{0}', space=sflag, size = 0x4, scoped, tag = 'scoped memory for tpu_custom_call.1']
    #allocation7 [shape = 'u8[32768]{0}', space=vmem, size = 0x8000, scoped, tag = 'input window, operand 8, single buffered']
    #allocation8 [shape = 'u8[4096]{0}', space=vmem, size = 0x1000, scoped, tag = 'output window, operand 0, single buffered']
    %15 = vsyncpa [#allocation3], 0
    %16 = vsyncpa [#allocation6], 0
    %17 = vsyncpa [#allocation4], 0
    // Predicated region
    $region2: #{tpu_custom_call.1} parent=1 // pred_check
      _
    $region3: #{tpu_custom_call.1} parent=1 // pred_check_branch
      %19 = sbr.rel (0) target = $region5
    $region4: #{tpu_custom_call.1} parent=1 // pred_region
      _
    $region5: #{tpu_custom_call.1} parent=1 // pred_fallthru
      _
    // Predicated region
    $region6: #{tpu_custom_call.1} parent=1 // pred_check
      _
    $region7: #{tpu_custom_call.1} parent=1 // pred_check_branch
      %21 = sbr.rel (0) target = $region9
    $region8: #{tpu_custom_call.1} parent=1 // pred_region
      _
    $region9: #{tpu_custom_call.1} parent=1 // pred_fallthru
      _
    // Predicated region
    $region10: #{tpu_custom_call.1} parent=1 // pred_check
      _
    $region11: #{tpu_custom_call.1} parent=1 // pred_check_branch
      %23 = sbr.rel (0) target = $region13
    $region12: #{tpu_custom_call.1} parent=1 // pred_region
      _
    $region13: #{tpu_custom_call.1} parent=1 // pred_fallthru
      _
    // Predicated region
    $region14: #{tpu_custom_call.1} parent=1 // pred_check
      _
    $region15: #{tpu_custom_call.1} parent=1 // pred_check_branch
      %25 = sbr.rel (0) target = $region17
    $region16: #{tpu_custom_call.1} parent=1 // pred_region
      _
    $region17: #{tpu_custom_call.1} parent=1 // pred_fallthru
      _
    // Predicated region
    $region18: #{tpu_custom_call.1} parent=1 // pred_check
      _
    $region19: #{tpu_custom_call.1} parent=1 // pred_check_branch
      %27 = sbr.rel (0) target = $region21
    $region20: #{tpu_custom_call.1} parent=1 // pred_region
      %29 = vsyncadd [#allocation3], 0
      %s30 = sshll.u32 %s4, 4
      %s31 = int_to_ptr.hbm [resolvable:$true] %s30
      %s32 = sshll.u32 [#allocation2], 4
      %s33 = int_to_ptr.vmem [resolvable:$true] %s32
      %38 = dma.hbm_to_vmem [thread:$0]  %s31, 3072, %s33, [#allocation3], 64, 64, 4
    $region21: #{tpu_custom_call.1} parent=1 // pred_fallthru
      _
    // Predicated region
    $region22: #{tpu_custom_call.1} parent=1 // pred_check
      _
    $region23: #{tpu_custom_call.1} parent=1 // pred_check_branch
      %40 = sbr.rel (0) target = $region25
    $region24: #{tpu_custom_call.1} parent=1 // pred_region
      _
    $region25: #{tpu_custom_call.1} parent=1 // pred_fallthru
      _
    // Predicated region
    $region26: #{tpu_custom_call.1} parent=1 // pred_check
      _
    $region27: #{tpu_custom_call.1} parent=1 // pred_check_branch
      %42 = sbr.rel (0) target = $region29
    $region28: #{tpu_custom_call.1} parent=1 // pred_region
      %44 = vsyncadd [#allocation6], 0
      %s45 = sshll.u32 %s6, 4
      %s46 = int_to_ptr.hbm [resolvable:$true] %s45
      %s47 = sshll.u32 [#allocation5], 4
      %s48 = int_to_ptr.vmem [resolvable:$true] %s47
      %53 = dma.hbm_to_vmem [thread:$0]  %s46, 3072, %s48, [#allocation6], 64, 64, 4
    $region29: #{tpu_custom_call.1} parent=1 // pred_fallthru
      _
    // Predicated region
    $region30: #{tpu_custom_call.1} parent=1 // pred_check
      _
    $region31: #{tpu_custom_call.1} parent=1 // pred_check_branch
      %55 = sbr.rel (0) target = $region33
    $region32: #{tpu_custom_call.1} parent=1 // pred_region
      _
    $region33: #{tpu_custom_call.1} parent=1 // pred_fallthru
      _
    // Predicated region
    $region34: #{tpu_custom_call.1} parent=1 // pred_check
      _
    $region35: #{tpu_custom_call.1} parent=1 // pred_check_branch
      %57 = sbr.rel (0) target = $region37
    $region36: #{tpu_custom_call.1} parent=1 // pred_region
      %59 = vsyncadd [#allocation6], 0
      %s60 = sshll.u32 %s8, 4
      %s61 = int_to_ptr.hbm [resolvable:$true] %s60
      %s62 = sshll.u32 [#allocation7], 4
      %s63 = int_to_ptr.vmem [resolvable:$true] %s62
      %68 = dma.hbm_to_vmem [thread:$0]  %s61, 1024, %s63, [#allocation6], 64, 64, 4
    $region37: #{tpu_custom_call.1} parent=1 // pred_fallthru
      _
    // Predicated region
    $region38: #{tpu_custom_call.1} parent=1 // pred_check
      _
    $region39: #{tpu_custom_call.1} parent=1 // pred_check_branch
      %70 = sbr.rel (0) target = $region41
    $region40: #{tpu_custom_call.1} parent=1 // pred_region
      _
    $region41: #{tpu_custom_call.1} parent=1 // pred_fallthru
      _
    // Predicated region
    $region42: #{tpu_custom_call.1} parent=1 // pred_check
      _
    $region43: #{tpu_custom_call.1} parent=1 // pred_check_branch
      %72 = sbr.rel (0) target = $region45
    $region44: #{tpu_custom_call.1} parent=1 // pred_region
      %74 = dma.done [#allocation3], 3072
    $region45: #{tpu_custom_call.1} parent=1 // pred_fallthru
      _
    // Predicated region
    $region46: #{tpu_custom_call.1} parent=1 // pred_check
      _
    $region47: #{tpu_custom_call.1} parent=1 // pred_check_branch
      %76 = sbr.rel (0) target = $region49
    $region48: #{tpu_custom_call.1} parent=1 // pred_region
      %78 = dma.done [#allocation6], 3072
    $region49: #{tpu_custom_call.1} parent=1 // pred_fallthru
      _
    // Predicated region
    $region50: #{tpu_custom_call.1} parent=1 // pred_check
      _
    $region51: #{tpu_custom_call.1} parent=1 // pred_check_branch
      %80 = sbr.rel (0) target = $region53
    $region52: #{tpu_custom_call.1} parent=1 // pred_region
      %82 = dma.done [#allocation6], 1024
    $region53: #{tpu_custom_call.1} parent=1 // pred_fallthru
      _
    %v83 = vld [vmem:[%s3] sm:$0x1]
    %v84 = vld [vmem:[%s0] sm:$0xff]
    %v85 = vld [vmem:[%s0 + $0x8] sm:$0xff]
    %v86 = vld [vmem:[%s1] sm:$0xff]
    %v87 = vld [vmem:[%s1 + $0x8] sm:$0xff]
    %v88 = vld [vmem:[%s2] sm:$0x1]
    %90 = vset.pattern.permute.xlu0 0
    %91 = vperm.xlu0 %90, %v84
    %v92 = vpop.permute.xlu0 %91
    %95 = vset.pattern.permute.xlu0 0
    %96 = vperm.xlu0 %95, %v85
    %v97 = vpop.permute.xlu0 %96
    %v99 = vperm.slane %v88, 0
    %v100 = vmul.f32 %v92, %v99
    %v101 = vmul.f32 %v97, %v99
    %v103 = vperm.slane %v83, 0
    %v105 = vadd.f32 %v100, %v103
    %v106 = vadd.f32 %v101, %v103
    %v107 = vand.u32 2147483647, %v105
    %vm108 = vcmp.le.f32.partialorder %v107, 0.7853982
    %vm109 = vcmp.lt.s32.totalorder %v105, 0
    %v110 = vand.u32 %v105, 2139095040
    %v111 = vshrl.u32 %v110, 23
    %v112 = vsub.s32 %v111, 127
    %v113 = vand.u32 2147483647, %v105
    %v114 = vand.u32 %v113, 8388607
    %v115 = vor.u32 %v114, 8388608
    %v116 = vsub.s32 0, %v115
    %v117 = vadd.s32 %v112, 1
    %vm118 = vcmp.gt.s32.totalorder %v117, 0
    %v119 = vsel %vm118, %v117, 0
    %v120 = vshrl.u32 %v119, 5
    %v121 = vand.u32 %v119, 31
    %v122 = vsub.s32 32, %v121
    %v123 = vshrl.u32 683565275, %v122
    %v124 = vshll.u32 683565275, %v121
    %v125 = vshrl.u32 2475754826, %v122
    %v126 = vor.u32 %v124, %v125
    %v127 = vshll.u32 2475754826, %v121
    %v128 = vshrl.u32 2131351028, %v122
    %v129 = vor.u32 %v127, %v128
    %v130 = vshll.u32 2131351028, %v121
    %v131 = vshrl.u32 2102212464, %v122
    %v132 = vor.u32 %v130, %v131
    %v133 = vshll.u32 2102212464, %v121
    %v134 = vshrl.u32 920167782, %v122
    %v135 = vor.u32 %v133, %v134
    %v136 = vshll.u32 920167782, %v121
    %v137 = vshrl.u32 1326507024, %v122
    %v138 = vor.u32 %v136, %v137
    %vm139 = vcmp.lt.s32.totalorder %v120, 1
    %vm140 = vcmp.lt.s32.totalorder %v120, 2
    %vm141 = vcmp.lt.s32.totalorder %v120, 3
    %vm142 = vcmp.lt.s32.totalorder %v120, 4
    %v143 = vsel %vm139, %v123, %v126
    %v144 = vsel %vm142, %v132, 2102212464
    %v145 = vsel %vm141, %v129, %v144
    %v146 = vsel %vm140, %v143, %v145
    %v147 = vsel %vm139, %v126, %v129
    %v148 = vsel %vm142, %v135, 920167782
    %v149 = vsel %vm141, %v132, %v148
    %v150 = vsel %vm140, %v147, %v149
    %v151 = vsel %vm139, %v129, %v132
    %v152 = vsel %vm142, %v138, 1326507024
    %v153 = vsel %vm141, %v135, %v152
    %v154 = vsel %vm140, %v151, %v153
    %v155 = vshll.u32 %v115, 8
    %v156 = vand.u32 %v155, 65535
    %v157 = vshrl.u32 %v155, 16
    %v158 = vand.u32 %v154, 65535
    %v159 = vshrl.u32 %v154, 16
    %v160 = vmul.u32 %v156, %v158
    %v161 = vmul.u32 %v156, %v159
    %v162 = vmul.u32 %v157, %v158
    %v163 = vmul.u32 %v157, %v159
    %v164 = vshll.u32 %v161, 16
    %v165 = vshrl.u32 %v161, 16
    %v166 = vshll.u32 %v162, 16
    %v167 = vshrl.u32 %v162, 16
    %vm168 = vc.u32 %v160, %v164
    %v169 = vsel %vm168, 1, 0
    %v170 = vadd.s32 %v160, %v164
    %v171 = vadd.s32 %v163, %v169
    %vm172 = vc.u32 %v170, %v166
    %v173 = vsel %vm172, 1, 0
    %v174 = vadd.s32 %v170, %v166
    %v175 = vadd.s32 %v171, %v173
    %v176 = vadd.s32 %v175, %v165
    %v177 = vadd.s32 %v176, %v167
    %v178 = vand.u32 %v155, 65535
    %v179 = vshrl.u32 %v155, 16
    %v180 = vand.u32 %v150, 65535
    %v181 = vshrl.u32 %v150, 16
    %v182 = vmul.u32 %v178, %v180
    %v183 = vmul.u32 %v178, %v181
    %v184 = vmul.u32 %v179, %v180
    %v185 = vmul.u32 %v179, %v181
    %v186 = vshll.u32 %v183, 16
    %v187 = vshrl.u32 %v183, 16
    %v188 = vshll.u32 %v184, 16
    %v189 = vshrl.u32 %v184, 16
    %vm190 = vc.u32 %v182, %v186
    %v191 = vsel %vm190, 1, 0
    %v192 = vadd.s32 %v182, %v186
    %v193 = vadd.s32 %v185, %v191
    %vm194 = vc.u32 %v192, %v188
    %v195 = vsel %vm194, 1, 0
    %v196 = vadd.s32 %v192, %v188
    %v197 = vadd.s32 %v193, %v195
    %v198 = vadd.s32 %v197, %v187
    %v199 = vadd.s32 %v198, %v189
    %v200 = vmul.u32 %v155, %v146
    %v201 = vadd.s32 %v177, %v196
    %vm202 = vc.u32 %v177, %v196
    %v203 = vadd.s32 %v199, 1
    %v204 = vsel %vm202, %v203, %v199
    %v205 = vadd.s32 %v200, %v204
    %v206 = vadd.s32 %v205, 536870912
    %v207 = vshrl.u32 %v206, 30
    %v208 = vshll.u32 %v207, 30
    %v209 = vsub.s32 %v205, %v208
    %vm210 = vcmp.lt.s32.totalorder %v209, 0
    %v211 = vsub.s32 0, %v209
    %v212 = vsel %vm210, %v211, %v209
    %v213 = vclz %v212
    %v214 = vsub.s32 %v213, 2
    %vm215 = vcmp.gt.s32.totalorder 0, %v214
    %v216 = vsel %vm215, 0, %v214
    %v217 = vsub.s32 32, %v216
    %v218 = vshll.u32 %v209, %v216
    %v219 = vshrl.u32 %v201, %v217
    %v220 = vor.u32 %v218, %v219
    %v221 = vsub.s32 4294967266, %v216
    %v222 = vadd.s32 %v221, 127
    %v223 = vshll.u32 %v222, 23
    %v224 = vor.u32 4788187, %v223
    %v225 = vand.u32 2147483647, %v224
    %v227 = vcvt.s32.f32 %v220
    %v228 = vmul.f32 %v227, %v225
    %v229 = vxor.u32 %v228, 2147483648
    %v230 = vsel %vm109, %v229, %v228
    %v231 = vsub.s32 4, %v207
    %v232 = vsel %vm109, %v231, %v207
    %v233 = vsel %vm108, %v105, %v230
    %v234 = vsel %vm108, 0, %v232
    %v235 = vmul.f32 %v233, %v233
    %v236 = vmul.f32 %v235, -0.001358992
    %v237 = vadd.f32 %v236, 0.041655596
    %v238 = vmul.f32 %v235, %v237
    %v239 = vadd.f32 %v238, -0.4999988
    %v240 = vmul.f32 %v235, %v239
    %v241 = vadd.f32 1.0, %v240
    %v242 = vmul.f32 %v233, %v233
    %v243 = vmul.f32 %v242, -0.00019511016
    %v244 = vadd.f32 %v243, 0.008332121
    %v245 = vmul.f32 %v242, %v244
    %v246 = vadd.f32 %v245, -0.16666654
    %v247 = vmul.f32 %v242, %v246
    %v248 = vadd.f32 %v247, 1.0
    %v249 = vmul.f32 %v248, %v233
    %vm250 = vweird.f32 %v105
    %v251 = vadd.s32 %v234, 3
    %v252 = vand.u32 %v251, 3
    %vm253 = vcmp.lt.s32.totalorder %v252, 2
    %vm254 = vcmp.eq.s32.totalorder %v252, 0
    %v255 = vxor.u32 %v249, 2147483648
    %v256 = vsel %vm254, %v241, %v255
    %vm257 = vcmp.eq.s32.totalorder %v252, 2
    %v258 = vxor.u32 %v241, 2147483648
    %v259 = vsel %vm257, %v258, %v249
    %v260 = vsel %vm253, %v256, %v259
    %v261 = vsel %vm250, nan, %v260
    %v262 = vand.u32 2147483647, %v106
    %vm263 = vcmp.le.f32.partialorder %v262, 0.7853982
    %vm264 = vcmp.lt.s32.totalorder %v106, 0
    %v265 = vand.u32 %v106, 2139095040
    %v266 = vshrl.u32 %v265, 23
    %v267 = vsub.s32 %v266, 127
    %v268 = vand.u32 2147483647, %v106
    %v269 = vand.u32 %v268, 8388607
    %v270 = vor.u32 %v269, 8388608
    %v271 = vsub.s32 0, %v270
    %v272 = vadd.s32 %v267, 1
    %vm273 = vcmp.gt.s32.totalorder %v272, 0
    %v274 = vsel %vm273, %v272, 0
    %v275 = vshrl.u32 %v274, 5
    %v276 = vand.u32 %v274, 31
    %v277 = vsub.s32 32, %v276
    %v278 = vshrl.u32 683565275, %v277
    %v279 = vshll.u32 683565275, %v276
    %v280 = vshrl.u32 2475754826, %v277
    %v281 = vor.u32 %v279, %v280
    %v282 = vshll.u32 2475754826, %v276
    %v283 = vshrl.u32 2131351028, %v277
    %v284 = vor.u32 %v282, %v283
    %v285 = vshll.u32 2131351028, %v276
    %v286 = vshrl.u32 2102212464, %v277
    %v287 = vor.u32 %v285, %v286
    %v288 = vshll.u32 2102212464, %v276
    %v289 = vshrl.u32 920167782, %v277
    %v290 = vor.u32 %v288, %v289
    %v291 = vshll.u32 920167782, %v276
    %v292 = vshrl.u32 1326507024, %v277
    %v293 = vor.u32 %v291, %v292
    %vm294 = vcmp.lt.s32.totalorder %v275, 1
    %vm295 = vcmp.lt.s32.totalorder %v275, 2
    %vm296 = vcmp.lt.s32.totalorder %v275, 3
    %vm297 = vcmp.lt.s32.totalorder %v275, 4
    %v298 = vsel %vm294, %v278, %v281
    %v299 = vsel %vm297, %v287, 2102212464
    %v300 = vsel %vm296, %v284, %v299
    %v301 = vsel %vm295, %v298, %v300
    %v302 = vsel %vm294, %v281, %v284
    %v303 = vsel %vm297, %v290, 920167782
    %v304 = vsel %vm296, %v287, %v303
    %v305 = vsel %vm295, %v302, %v304
    %v306 = vsel %vm294, %v284, %v287
    %v307 = vsel %vm297, %v293, 1326507024
    %v308 = vsel %vm296, %v290, %v307
    %v309 = vsel %vm295, %v306, %v308
    %v310 = vshll.u32 %v270, 8
    %v311 = vand.u32 %v310, 65535
    %v312 = vshrl.u32 %v310, 16
    %v313 = vand.u32 %v309, 65535
    %v314 = vshrl.u32 %v309, 16
    %v315 = vmul.u32 %v311, %v313
    %v316 = vmul.u32 %v311, %v314
    %v317 = vmul.u32 %v312, %v313
    %v318 = vmul.u32 %v312, %v314
    %v319 = vshll.u32 %v316, 16
    %v320 = vshrl.u32 %v316, 16
    %v321 = vshll.u32 %v317, 16
    %v322 = vshrl.u32 %v317, 16
    %vm323 = vc.u32 %v315, %v319
    %v324 = vsel %vm323, 1, 0
    %v325 = vadd.s32 %v315, %v319
    %v326 = vadd.s32 %v318, %v324
    %vm327 = vc.u32 %v325, %v321
    %v328 = vsel %vm327, 1, 0
    %v329 = vadd.s32 %v325, %v321
    %v330 = vadd.s32 %v326, %v328
    %v331 = vadd.s32 %v330, %v320
    %v332 = vadd.s32 %v331, %v322
    %v333 = vand.u32 %v310, 65535
    %v334 = vshrl.u32 %v310, 16
    %v335 = vand.u32 %v305, 65535
    %v336 = vshrl.u32 %v305, 16
    %v337 = vmul.u32 %v333, %v335
    %v338 = vmul.u32 %v333, %v336
    %v339 = vmul.u32 %v334, %v335
    %v340 = vmul.u32 %v334, %v336
    %v341 = vshll.u32 %v338, 16
    %v342 = vshrl.u32 %v338, 16
    %v343 = vshll.u32 %v339, 16
    %v344 = vshrl.u32 %v339, 16
    %vm345 = vc.u32 %v337, %v341
    %v346 = vsel %vm345, 1, 0
    %v347 = vadd.s32 %v337, %v341
    %v348 = vadd.s32 %v340, %v346
    %vm349 = vc.u32 %v347, %v343
    %v350 = vsel %vm349, 1, 0
    %v351 = vadd.s32 %v347, %v343
    %v352 = vadd.s32 %v348, %v350
    %v353 = vadd.s32 %v352, %v342
    %v354 = vadd.s32 %v353, %v344
    %v355 = vmul.u32 %v310, %v301
    %v356 = vadd.s32 %v332, %v351
    %vm357 = vc.u32 %v332, %v351
    %v358 = vadd.s32 %v354, 1
    %v359 = vsel %vm357, %v358, %v354
    %v360 = vadd.s32 %v355, %v359
    %v361 = vadd.s32 %v360, 536870912
    %v362 = vshrl.u32 %v361, 30
    %v363 = vshll.u32 %v362, 30
    %v364 = vsub.s32 %v360, %v363
    %vm365 = vcmp.lt.s32.totalorder %v364, 0
    %v366 = vsub.s32 0, %v364
    %v367 = vsel %vm365, %v366, %v364
    %v368 = vclz %v367
    %v369 = vsub.s32 %v368, 2
    %vm370 = vcmp.gt.s32.totalorder 0, %v369
    %v371 = vsel %vm370, 0, %v369
    %v372 = vsub.s32 32, %v371
    %v373 = vshll.u32 %v364, %v371
    %v374 = vshrl.u32 %v356, %v372
    %v375 = vor.u32 %v373, %v374
    %v376 = vsub.s32 4294967266, %v371
    %v377 = vadd.s32 %v376, 127
    %v378 = vshll.u32 %v377, 23
    %v379 = vor.u32 4788187, %v378
    %v380 = vand.u32 2147483647, %v379
    %v382 = vcvt.s32.f32 %v375
    %v383 = vmul.f32 %v382, %v380
    %v384 = vxor.u32 %v383, 2147483648
    %v385 = vsel %vm264, %v384, %v383
    %v386 = vsub.s32 4, %v362
    %v387 = vsel %vm264, %v386, %v362
    %v388 = vsel %vm263, %v106, %v385
    %v389 = vsel %vm263, 0, %v387
    %v390 = vmul.f32 %v388, %v388
    %v391 = vmul.f32 %v390, -0.001358992
    %v392 = vadd.f32 %v391, 0.041655596
    %v393 = vmul.f32 %v390, %v392
    %v394 = vadd.f32 %v393, -0.4999988
    %v395 = vmul.f32 %v390, %v394
    %v396 = vadd.f32 1.0, %v395
    %v397 = vmul.f32 %v388, %v388
    %v398 = vmul.f32 %v397, -0.00019511016
    %v399 = vadd.f32 %v398, 0.008332121
    %v400 = vmul.f32 %v397, %v399
    %v401 = vadd.f32 %v400, -0.16666654
    %v402 = vmul.f32 %v397, %v401
    %v403 = vadd.f32 %v402, 1.0
    %v404 = vmul.f32 %v403, %v388
    %vm405 = vweird.f32 %v106
    %v406 = vadd.s32 %v389, 3
    %v407 = vand.u32 %v406, 3
    %vm408 = vcmp.lt.s32.totalorder %v407, 2
    %vm409 = vcmp.eq.s32.totalorder %v407, 0
    %v410 = vxor.u32 %v404, 2147483648
    %v411 = vsel %vm409, %v396, %v410
    %vm412 = vcmp.eq.s32.totalorder %v407, 2
    %v413 = vxor.u32 %v396, 2147483648
    %v414 = vsel %vm412, %v413, %v404
    %v415 = vsel %vm408, %v411, %v414
    %v416 = vsel %vm405, nan, %v415
    %v417 = vld [vmem:[%s2 + $0x1] sm:$0x1]
    %418 = vset.pattern.permute.xlu0 1
    %419 = vperm.xlu0 %418, %v84
    %v420 = vpop.permute.xlu0 %419
    %422 = vset.pattern.permute.xlu0 1
    %423 = vperm.xlu0 %422, %v85
    %v424 = vpop.permute.xlu0 %423
    %v426 = vperm.slane %v417, 0
    %v427 = vmul.f32 %v420, %v426
    %v428 = vmul.f32 %v424, %v426
    %v429 = vadd.f32 %v427, %v103
    %v430 = vadd.f32 %v428, %v103
    %v431 = vand.u32 2147483647, %v429
    %vm432 = vcmp.le.f32.partialorder %v431, 0.7853982
    %vm433 = vcmp.lt.s32.totalorder %v429, 0
    %v434 = vand.u32 %v429, 2139095040
    %v435 = vshrl.u32 %v434, 23
    %v436 = vsub.s32 %v435, 127
    %v437 = vand.u32 2147483647, %v429
    %v438 = vand.u32 %v437, 8388607
    %v439 = vor.u32 %v438, 8388608
    %v440 = vsub.s32 0, %v439
    %v441 = vadd.s32 %v436, 1
    %vm442 = vcmp.gt.s32.totalorder %v441, 0
    %v443 = vsel %vm442, %v441, 0
    %v444 = vshrl.u32 %v443, 5
    %v445 = vand.u32 %v443, 31
    %v446 = vsub.s32 32, %v445
    %v447 = vshrl.u32 683565275, %v446
    %v448 = vshll.u32 683565275, %v445
    %v449 = vshrl.u32 2475754826, %v446
    %v450 = vor.u32 %v448, %v449
    %v451 = vshll.u32 2475754826, %v445
    %v452 = vshrl.u32 2131351028, %v446
    %v453 = vor.u32 %v451, %v452
    %v454 = vshll.u32 2131351028, %v445
    %v455 = vshrl.u32 2102212464, %v446
    %v456 = vor.u32 %v454, %v455
    %v457 = vshll.u32 2102212464, %v445
    %v458 = vshrl.u32 920167782, %v446
    %v459 = vor.u32 %v457, %v458
    %v460 = vshll.u32 920167782, %v445
    %v461 = vshrl.u32 1326507024, %v446
    %v462 = vor.u32 %v460, %v461
    %vm463 = vcmp.lt.s32.totalorder %v444, 1
    %vm464 = vcmp.lt.s32.totalorder %v444, 2
    %vm465 = vcmp.lt.s32.totalorder %v444, 3
    %vm466 = vcmp.lt.s32.totalorder %v444, 4
    %v467 = vsel %vm463, %v447, %v450
    %v468 = vsel %vm466, %v456, 2102212464
    %v469 = vsel %vm465, %v453, %v468
    %v470 = vsel %vm464, %v467, %v469
    %v471 = vsel %vm463, %v450, %v453
    %v472 = vsel %vm466, %v459, 920167782
    %v473 = vsel %vm465, %v456, %v472
    %v474 = vsel %vm464, %v471, %v473
    %v475 = vsel %vm463, %v453, %v456
    %v476 = vsel %vm466, %v462, 1326507024
    %v477 = vsel %vm465, %v459, %v476
    %v478 = vsel %vm464, %v475, %v477
    %v479 = vshll.u32 %v439, 8
    %v480 = vand.u32 %v479, 65535
    %v481 = vshrl.u32 %v479, 16
    %v482 = vand.u32 %v478, 65535
    %v483 = vshrl.u32 %v478, 16
    %v484 = vmul.u32 %v480, %v482
    %v485 = vmul.u32 %v480, %v483
    %v486 = vmul.u32 %v481, %v482
    %v487 = vmul.u32 %v481, %v483
    %v488 = vshll.u32 %v485, 16
    %v489 = vshrl.u32 %v485, 16
    %v490 = vshll.u32 %v486, 16
    %v491 = vshrl.u32 %v486, 16
    %vm492 = vc.u32 %v484, %v488
    %v493 = vsel %vm492, 1, 0
    %v494 = vadd.s32 %v484, %v488
    %v495 = vadd.s32 %v487, %v493
    %vm496 = vc.u32 %v494, %v490
    %v497 = vsel %vm496, 1, 0
    %v498 = vadd.s32 %v494, %v490
    %v499 = vadd.s32 %v495, %v497
    %v500 = vadd.s32 %v499, %v489
    %v501 = vadd.s32 %v500, %v491
    %v502 = vand.u32 %v479, 65535
    %v503 = vshrl.u32 %v479, 16
    %v504 = vand.u32 %v474, 65535
    %v505 = vshrl.u32 %v474, 16
    %v506 = vmul.u32 %v502, %v504
    %v507 = vmul.u32 %v502, %v505
    %v508 = vmul.u32 %v503, %v504
    %v509 = vmul.u32 %v503, %v505
    %v510 = vshll.u32 %v507, 16
    %v511 = vshrl.u32 %v507, 16
    %v512 = vshll.u32 %v508, 16
    %v513 = vshrl.u32 %v508, 16
    %vm514 = vc.u32 %v506, %v510
    %v515 = vsel %vm514, 1, 0
    %v516 = vadd.s32 %v506, %v510
    %v517 = vadd.s32 %v509, %v515
    %vm518 = vc.u32 %v516, %v512
    %v519 = vsel %vm518, 1, 0
    %v520 = vadd.s32 %v516, %v512
    %v521 = vadd.s32 %v517, %v519
    %v522 = vadd.s32 %v521, %v511
    %v523 = vadd.s32 %v522, %v513
    %v524 = vmul.u32 %v479, %v470
    %v525 = vadd.s32 %v501, %v520
    %vm526 = vc.u32 %v501, %v520
    %v527 = vadd.s32 %v523, 1
    %v528 = vsel %vm526, %v527, %v523
    %v529 = vadd.s32 %v524, %v528
    %v530 = vadd.s32 %v529, 536870912
    %v531 = vshrl.u32 %v530, 30
    %v532 = vshll.u32 %v531, 30
    %v533 = vsub.s32 %v529, %v532
    %vm534 = vcmp.lt.s32.totalorder %v533, 0
    %v535 = vsub.s32 0, %v533
    %v536 = vsel %vm534, %v535, %v533
    %v537 = vclz %v536
    %v538 = vsub.s32 %v537, 2
    %vm539 = vcmp.gt.s32.totalorder 0, %v538
    %v540 = vsel %vm539, 0, %v538
    %v541 = vsub.s32 32, %v540
    %v542 = vshll.u32 %v533, %v540
    %v543 = vshrl.u32 %v525, %v541
    %v544 = vor.u32 %v542, %v543
    %v545 = vsub.s32 4294967266, %v540
    %v546 = vadd.s32 %v545, 127
    %v547 = vshll.u32 %v546, 23
    %v548 = vor.u32 4788187, %v547
    %v549 = vand.u32 2147483647, %v548
    %v551 = vcvt.s32.f32 %v544
    %v552 = vmul.f32 %v551, %v549
    %v553 = vxor.u32 %v552, 2147483648
    %v554 = vsel %vm433, %v553, %v552
    %v555 = vsub.s32 4, %v531
    %v556 = vsel %vm433, %v555, %v531
    %v557 = vsel %vm432, %v429, %v554
    %v558 = vsel %vm432, 0, %v556
    %v559 = vmul.f32 %v557, %v557
    %v560 = vmul.f32 %v559, -0.001358992
    %v561 = vadd.f32 %v560, 0.041655596
    %v562 = vmul.f32 %v559, %v561
    %v563 = vadd.f32 %v562, -0.4999988
    %v564 = vmul.f32 %v559, %v563
    %v565 = vadd.f32 1.0, %v564
    %v566 = vmul.f32 %v557, %v557
    %v567 = vmul.f32 %v566, -0.00019511016
    %v568 = vadd.f32 %v567, 0.008332121
    %v569 = vmul.f32 %v566, %v568
    %v570 = vadd.f32 %v569, -0.16666654
    %v571 = vmul.f32 %v566, %v570
    %v572 = vadd.f32 %v571, 1.0
    %v573 = vmul.f32 %v572, %v557
    %vm574 = vweird.f32 %v429
    %v575 = vadd.s32 %v558, 3
    %v576 = vand.u32 %v575, 3
    %vm577 = vcmp.lt.s32.totalorder %v576, 2
    %vm578 = vcmp.eq.s32.totalorder %v576, 0
    %v579 = vxor.u32 %v573, 2147483648
    %v580 = vsel %vm578, %v565, %v579
    %vm581 = vcmp.eq.s32.totalorder %v576, 2
    %v582 = vxor.u32 %v565, 2147483648
    %v583 = vsel %vm581, %v582, %v573
    %v584 = vsel %vm577, %v580, %v583
    %v585 = vsel %vm574, nan, %v584
    %v586 = vand.u32 2147483647, %v430
    %vm587 = vcmp.le.f32.partialorder %v586, 0.7853982
    %vm588 = vcmp.lt.s32.totalorder %v430, 0
    %v589 = vand.u32 %v430, 2139095040
    %v590 = vshrl.u32 %v589, 23
    %v591 = vsub.s32 %v590, 127
    %v592 = vand.u32 2147483647, %v430
    %v593 = vand.u32 %v592, 8388607
    %v594 = vor.u32 %v593, 8388608
    %v595 = vsub.s32 0, %v594
    %v596 = vadd.s32 %v591, 1
    %vm597 = vcmp.gt.s32.totalorder %v596, 0
    %v598 = vsel %vm597, %v596, 0
    %v599 = vshrl.u32 %v598, 5
    %v600 = vand.u32 %v598, 31
    %v601 = vsub.s32 32, %v600
    %v602 = vshrl.u32 683565275, %v601
    %v603 = vshll.u32 683565275, %v600
    %v604 = vshrl.u32 2475754826, %v601
    %v605 = vor.u32 %v603, %v604
    %v606 = vshll.u32 2475754826, %v600
    %v607 = vshrl.u32 2131351028, %v601
    %v608 = vor.u32 %v606, %v607
    %v609 = vshll.u32 2131351028, %v600
    %v610 = vshrl.u32 2102212464, %v601
    %v611 = vor.u32 %v609, %v610
    %v612 = vshll.u32 2102212464, %v600
    %v613 = vshrl.u32 920167782, %v601
    %v614 = vor.u32 %v612, %v613
    %v615 = vshll.u32 920167782, %v600
    %v616 = vshrl.u32 1326507024, %v601
    %v617 = vor.u32 %v615, %v616
    %vm618 = vcmp.lt.s32.totalorder %v599, 1
    %vm619 = vcmp.lt.s32.totalorder %v599, 2
    %vm620 = vcmp.lt.s32.totalorder %v599, 3
    %vm621 = vcmp.lt.s32.totalorder %v599, 4
    %v622 = vsel %vm618, %v602, %v605
    %v623 = vsel %vm621, %v611, 2102212464
    %v624 = vsel %vm620, %v608, %v623
    %v625 = vsel %vm619, %v622, %v624
    %v626 = vsel %vm618, %v605, %v608
    %v627 = vsel %vm621, %v614, 920167782
    %v628 = vsel %vm620, %v611, %v627
    %v629 = vsel %vm619, %v626, %v628
    %v630 = vsel %vm618, %v608, %v611
    %v631 = vsel %vm621, %v617, 1326507024
    %v632 = vsel %vm620, %v614, %v631
    %v633 = vsel %vm619, %v630, %v632
    %v634 = vshll.u32 %v594, 8
    %v635 = vand.u32 %v634, 65535
    %v636 = vshrl.u32 %v634, 16
    %v637 = vand.u32 %v633, 65535
    %v638 = vshrl.u32 %v633, 16
    %v639 = vmul.u32 %v635, %v637
    %v640 = vmul.u32 %v635, %v638
    %v641 = vmul.u32 %v636, %v637
    %v642 = vmul.u32 %v636, %v638
    %v643 = vshll.u32 %v640, 16
    %v644 = vshrl.u32 %v640, 16
    %v645 = vshll.u32 %v641, 16
    %v646 = vshrl.u32 %v641, 16
    %vm647 = vc.u32 %v639, %v643
    %v648 = vsel %vm647, 1, 0
    %v649 = vadd.s32 %v639, %v643
    %v650 = vadd.s32 %v642, %v648
    %vm651 = vc.u32 %v649, %v645
    %v652 = vsel %vm651, 1, 0
    %v653 = vadd.s32 %v649, %v645
    %v654 = vadd.s32 %v650, %v652
    %v655 = vadd.s32 %v654, %v644
    %v656 = vadd.s32 %v655, %v646
    %v657 = vand.u32 %v634, 65535
    %v658 = vshrl.u32 %v634, 16
    %v659 = vand.u32 %v629, 65535
    %v660 = vshrl.u32 %v629, 16
    %v661 = vmul.u32 %v657, %v659
    %v662 = vmul.u32 %v657, %v660
    %v663 = vmul.u32 %v658, %v659
    %v664 = vmul.u32 %v658, %v660
    %v665 = vshll.u32 %v662, 16
    %v666 = vshrl.u32 %v662, 16
    %v667 = vshll.u32 %v663, 16
    %v668 = vshrl.u32 %v663, 16
    %vm669 = vc.u32 %v661, %v665
    %v670 = vsel %vm669, 1, 0
    %v671 = vadd.s32 %v661, %v665
    %v672 = vadd.s32 %v664, %v670
    %vm673 = vc.u32 %v671, %v667
    %v674 = vsel %vm673, 1, 0
    %v675 = vadd.s32 %v671, %v667
    %v676 = vadd.s32 %v672, %v674
    %v677 = vadd.s32 %v676, %v666
    %v678 = vadd.s32 %v677, %v668
    %v679 = vmul.u32 %v634, %v625
    %v680 = vadd.s32 %v656, %v675
    %vm681 = vc.u32 %v656, %v675
    %v682 = vadd.s32 %v678, 1
    %v683 = vsel %vm681, %v682, %v678
    %v684 = vadd.s32 %v679, %v683
    %v685 = vadd.s32 %v684, 536870912
    %v686 = vshrl.u32 %v685, 30
    %v687 = vshll.u32 %v686, 30
    %v688 = vsub.s32 %v684, %v687
    %vm689 = vcmp.lt.s32.totalorder %v688, 0
    %v690 = vsub.s32 0, %v688
    %v691 = vsel %vm689, %v690, %v688
    %v692 = vclz %v691
    %v693 = vsub.s32 %v692, 2
    %vm694 = vcmp.gt.s32.totalorder 0, %v693
    %v695 = vsel %vm694, 0, %v693
    %v696 = vsub.s32 32, %v695
    %v697 = vshll.u32 %v688, %v695
    %v698 = vshrl.u32 %v680, %v696
    %v699 = vor.u32 %v697, %v698
    %v700 = vsub.s32 4294967266, %v695
    %v701 = vadd.s32 %v700, 127
    %v702 = vshll.u32 %v701, 23
    %v703 = vor.u32 4788187, %v702
    %v704 = vand.u32 2147483647, %v703
    %v706 = vcvt.s32.f32 %v699
    %v707 = vmul.f32 %v706, %v704
    %v708 = vxor.u32 %v707, 2147483648
    %v709 = vsel %vm588, %v708, %v707
    %v710 = vsub.s32 4, %v686
    %v711 = vsel %vm588, %v710, %v686
    %v712 = vsel %vm587, %v430, %v709
    %v713 = vsel %vm587, 0, %v711
    %v714 = vmul.f32 %v712, %v712
    %v715 = vmul.f32 %v714, -0.001358992
    %v716 = vadd.f32 %v715, 0.041655596
    %v717 = vmul.f32 %v714, %v716
    %v718 = vadd.f32 %v717, -0.4999988
    %v719 = vmul.f32 %v714, %v718
    %v720 = vadd.f32 1.0, %v719
    %v721 = vmul.f32 %v712, %v712
    %v722 = vmul.f32 %v721, -0.00019511016
    %v723 = vadd.f32 %v722, 0.008332121
    %v724 = vmul.f32 %v721, %v723
    %v725 = vadd.f32 %v724, -0.16666654
    %v726 = vmul.f32 %v721, %v725
    %v727 = vadd.f32 %v726, 1.0
    %v728 = vmul.f32 %v727, %v712
    %vm729 = vweird.f32 %v430
    %v730 = vadd.s32 %v713, 3
    %v731 = vand.u32 %v730, 3
    %vm732 = vcmp.lt.s32.totalorder %v731, 2
    %vm733 = vcmp.eq.s32.totalorder %v731, 0
    %v734 = vxor.u32 %v728, 2147483648
    %v735 = vsel %vm733, %v720, %v734
    %vm736 = vcmp.eq.s32.totalorder %v731, 2
    %v737 = vxor.u32 %v720, 2147483648
    %v738 = vsel %vm736, %v737, %v728
    %v739 = vsel %vm732, %v735, %v738
    %v740 = vsel %vm729, nan, %v739
    %v741 = vld [vmem:[%s2 + $0x2] sm:$0x1]
    %743 = vset.pattern.permute.xlu0 0
    %744 = vperm.xlu0 %743, %v86
    %v745 = vpop.permute.xlu0 %744
    %748 = vset.pattern.permute.xlu0 0
    %749 = vperm.xlu0 %748, %v87
    %v750 = vpop.permute.xlu0 %749
    %v752 = vperm.slane %v741, 0
    %v753 = vmul.f32 %v745, %v752
    %v754 = vmul.f32 %v750, %v752
    %v755 = vadd.f32 %v753, %v103
    %v756 = vadd.f32 %v754, %v103
    %v757 = vand.u32 2147483647, %v755
    %vm758 = vcmp.le.f32.partialorder %v757, 0.7853982
    %vm759 = vcmp.lt.s32.totalorder %v755, 0
    %v760 = vand.u32 %v755, 2139095040
    %v761 = vshrl.u32 %v760, 23
    %v762 = vsub.s32 %v761, 127
    %v763 = vand.u32 2147483647, %v755
    %v764 = vand.u32 %v763, 8388607
    %v765 = vor.u32 %v764, 8388608
    %v766 = vsub.s32 0, %v765
    %v767 = vadd.s32 %v762, 1
    %vm768 = vcmp.gt.s32.totalorder %v767, 0
    %v769 = vsel %vm768, %v767, 0
    %v770 = vshrl.u32 %v769, 5
    %v771 = vand.u32 %v769, 31
    %v772 = vsub.s32 32, %v771
    %v773 = vshrl.u32 683565275, %v772
    %v774 = vshll.u32 683565275, %v771
    %v775 = vshrl.u32 2475754826, %v772
    %v776 = vor.u32 %v774, %v775
    %v777 = vshll.u32 2475754826, %v771
    %v778 = vshrl.u32 2131351028, %v772
    %v779 = vor.u32 %v777, %v778
    %v780 = vshll.u32 2131351028, %v771
    %v781 = vshrl.u32 2102212464, %v772
    %v782 = vor.u32 %v780, %v781
    %v783 = vshll.u32 2102212464, %v771
    %v784 = vshrl.u32 920167782, %v772
    %v785 = vor.u32 %v783, %v784
    %v786 = vshll.u32 920167782, %v771
    %v787 = vshrl.u32 1326507024, %v772
    %v788 = vor.u32 %v786, %v787
    %vm789 = vcmp.lt.s32.totalorder %v770, 1
    %vm790 = vcmp.lt.s32.totalorder %v770, 2
    %vm791 = vcmp.lt.s32.totalorder %v770, 3
    %vm792 = vcmp.lt.s32.totalorder %v770, 4
    %v793 = vsel %vm789, %v773, %v776
    %v794 = vsel %vm792, %v782, 2102212464
    %v795 = vsel %vm791, %v779, %v794
    %v796 = vsel %vm790, %v793, %v795
    %v797 = vsel %vm789, %v776, %v779
    %v798 = vsel %vm792, %v785, 920167782
    %v799 = vsel %vm791, %v782, %v798
    %v800 = vsel %vm790, %v797, %v799
    %v801 = vsel %vm789, %v779, %v782
    %v802 = vsel %vm792, %v788, 1326507024
    %v803 = vsel %vm791, %v785, %v802
    %v804 = vsel %vm790, %v801, %v803
    %v805 = vshll.u32 %v765, 8
    %v806 = vand.u32 %v805, 65535
    %v807 = vshrl.u32 %v805, 16
    %v808 = vand.u32 %v804, 65535
    %v809 = vshrl.u32 %v804, 16
    %v810 = vmul.u32 %v806, %v808
    %v811 = vmul.u32 %v806, %v809
    %v812 = vmul.u32 %v807, %v808
    %v813 = vmul.u32 %v807, %v809
    %v814 = vshll.u32 %v811, 16
    %v815 = vshrl.u32 %v811, 16
    %v816 = vshll.u32 %v812, 16
    %v817 = vshrl.u32 %v812, 16
    %vm818 = vc.u32 %v810, %v814
    %v819 = vsel %vm818, 1, 0
    %v820 = vadd.s32 %v810, %v814
    %v821 = vadd.s32 %v813, %v819
    %vm822 = vc.u32 %v820, %v816
    %v823 = vsel %vm822, 1, 0
    %v824 = vadd.s32 %v820, %v816
    %v825 = vadd.s32 %v821, %v823
    %v826 = vadd.s32 %v825, %v815
    %v827 = vadd.s32 %v826, %v817
    %v828 = vand.u32 %v805, 65535
    %v829 = vshrl.u32 %v805, 16
    %v830 = vand.u32 %v800, 65535
    %v831 = vshrl.u32 %v800, 16
    %v832 = vmul.u32 %v828, %v830
    %v833 = vmul.u32 %v828, %v831
    %v834 = vmul.u32 %v829, %v830
    %v835 = vmul.u32 %v829, %v831
    %v836 = vshll.u32 %v833, 16
    %v837 = vshrl.u32 %v833, 16
    %v838 = vshll.u32 %v834, 16
    %v839 = vshrl.u32 %v834, 16
    %vm840 = vc.u32 %v832, %v836
    %v841 = vsel %vm840, 1, 0
    %v842 = vadd.s32 %v832, %v836
    %v843 = vadd.s32 %v835, %v841
    %vm844 = vc.u32 %v842, %v838
    %v845 = vsel %vm844, 1, 0
    %v846 = vadd.s32 %v842, %v838
    %v847 = vadd.s32 %v843, %v845
    %v848 = vadd.s32 %v847, %v837
    %v849 = vadd.s32 %v848, %v839
    %v850 = vmul.u32 %v805, %v796
    %v851 = vadd.s32 %v827, %v846
    %vm852 = vc.u32 %v827, %v846
    %v853 = vadd.s32 %v849, 1
    %v854 = vsel %vm852, %v853, %v849
    %v855 = vadd.s32 %v850, %v854
    %v856 = vadd.s32 %v855, 536870912
    %v857 = vshrl.u32 %v856, 30
    %v858 = vshll.u32 %v857, 30
    %v859 = vsub.s32 %v855, %v858
    %vm860 = vcmp.lt.s32.totalorder %v859, 0
    %v861 = vsub.s32 0, %v859
    %v862 = vsel %vm860, %v861, %v859
    %v863 = vclz %v862
    %v864 = vsub.s32 %v863, 2
    %vm865 = vcmp.gt.s32.totalorder 0, %v864
    %v866 = vsel %vm865, 0, %v864
    %v867 = vsub.s32 32, %v866
    %v868 = vshll.u32 %v859, %v866
    %v869 = vshrl.u32 %v851, %v867
    %v870 = vor.u32 %v868, %v869
    %v871 = vsub.s32 4294967266, %v866
    %v872 = vadd.s32 %v871, 127
    %v873 = vshll.u32 %v872, 23
    %v874 = vor.u32 4788187, %v873
    %v875 = vand.u32 2147483647, %v874
    %v877 = vcvt.s32.f32 %v870
    %v878 = vmul.f32 %v877, %v875
    %v879 = vxor.u32 %v878, 2147483648
    %v880 = vsel %vm759, %v879, %v878
    %v881 = vsub.s32 4, %v857
    %v882 = vsel %vm759, %v881, %v857
    %v883 = vsel %vm758, %v755, %v880
    %v884 = vsel %vm758, 0, %v882
    %v885 = vmul.f32 %v883, %v883
    %v886 = vmul.f32 %v885, -0.001358992
    %v887 = vadd.f32 %v886, 0.041655596
    %v888 = vmul.f32 %v885, %v887
    %v889 = vadd.f32 %v888, -0.4999988
    %v890 = vmul.f32 %v885, %v889
    %v891 = vadd.f32 1.0, %v890
    %v892 = vmul.f32 %v883, %v883
    %v893 = vmul.f32 %v892, -0.00019511016
    %v894 = vadd.f32 %v893, 0.008332121
    %v895 = vmul.f32 %v892, %v894
    %v896 = vadd.f32 %v895, -0.16666654
    %v897 = vmul.f32 %v892, %v896
    %v898 = vadd.f32 %v897, 1.0
    %v899 = vmul.f32 %v898, %v883
    %vm900 = vweird.f32 %v755
    %v901 = vadd.s32 %v884, 3
    %v902 = vand.u32 %v901, 3
    %vm903 = vcmp.lt.s32.totalorder %v902, 2
    %vm904 = vcmp.eq.s32.totalorder %v902, 0
    %v905 = vxor.u32 %v899, 2147483648
    %v906 = vsel %vm904, %v891, %v905
    %vm907 = vcmp.eq.s32.totalorder %v902, 2
    %v908 = vxor.u32 %v891, 2147483648
    %v909 = vsel %vm907, %v908, %v899
    %v910 = vsel %vm903, %v906, %v909
    %v911 = vsel %vm900, nan, %v910
    %v912 = vand.u32 2147483647, %v756
    %vm913 = vcmp.le.f32.partialorder %v912, 0.7853982
    %vm914 = vcmp.lt.s32.totalorder %v756, 0
    %v915 = vand.u32 %v756, 2139095040
    %v916 = vshrl.u32 %v915, 23
    %v917 = vsub.s32 %v916, 127
    %v918 = vand.u32 2147483647, %v756
    %v919 = vand.u32 %v918, 8388607
    %v920 = vor.u32 %v919, 8388608
    %v921 = vsub.s32 0, %v920
    %v922 = vadd.s32 %v917, 1
    %vm923 = vcmp.gt.s32.totalorder %v922, 0
    %v924 = vsel %vm923, %v922, 0
    %v925 = vshrl.u32 %v924, 5
    %v926 = vand.u32 %v924, 31
    %v927 = vsub.s32 32, %v926
    %v928 = vshrl.u32 683565275, %v927
    %v929 = vshll.u32 683565275, %v926
    %v930 = vshrl.u32 2475754826, %v927
    %v931 = vor.u32 %v929, %v930
    %v932 = vshll.u32 2475754826, %v926
    %v933 = vshrl.u32 2131351028, %v927
    %v934 = vor.u32 %v932, %v933
    %v935 = vshll.u32 2131351028, %v926
    %v936 = vshrl.u32 2102212464, %v927
    %v937 = vor.u32 %v935, %v936
    %v938 = vshll.u32 2102212464, %v926
    %v939 = vshrl.u32 920167782, %v927
    %v940 = vor.u32 %v938, %v939
    %v941 = vshll.u32 920167782, %v926
    %v942 = vshrl.u32 1326507024, %v927
    %v943 = vor.u32 %v941, %v942
    %vm944 = vcmp.lt.s32.totalorder %v925, 1
    %vm945 = vcmp.lt.s32.totalorder %v925, 2
    %vm946 = vcmp.lt.s32.totalorder %v925, 3
    %vm947 = vcmp.lt.s32.totalorder %v925, 4
    %v948 = vsel %vm944, %v928, %v931
    %v949 = vsel %vm947, %v937, 2102212464
    %v950 = vsel %vm946, %v934, %v949
    %v951 = vsel %vm945, %v948, %v950
    %v952 = vsel %vm944, %v931, %v934
    %v953 = vsel %vm947, %v940, 920167782
    %v954 = vsel %vm946, %v937, %v953
    %v955 = vsel %vm945, %v952, %v954
    %v956 = vsel %vm944, %v934, %v937
    %v957 = vsel %vm947, %v943, 1326507024
    %v958 = vsel %vm946, %v940, %v957
    %v959 = vsel %vm945, %v956, %v958
    %v960 = vshll.u32 %v920, 8
    %v961 = vand.u32 %v960, 65535
    %v962 = vshrl.u32 %v960, 16
    %v963 = vand.u32 %v959, 65535
    %v964 = vshrl.u32 %v959, 16
    %v965 = vmul.u32 %v961, %v963
    %v966 = vmul.u32 %v961, %v964
    %v967 = vmul.u32 %v962, %v963
    %v968 = vmul.u32 %v962, %v964
    %v969 = vshll.u32 %v966, 16
    %v970 = vshrl.u32 %v966, 16
    %v971 = vshll.u32 %v967, 16
    %v972 = vshrl.u32 %v967, 16
    %vm973 = vc.u32 %v965, %v969
    %v974 = vsel %vm973, 1, 0
    %v975 = vadd.s32 %v965, %v969
    %v976 = vadd.s32 %v968, %v974
    %vm977 = vc.u32 %v975, %v971
    %v978 = vsel %vm977, 1, 0
    %v979 = vadd.s32 %v975, %v971
    %v980 = vadd.s32 %v976, %v978
    %v981 = vadd.s32 %v980, %v970
    %v982 = vadd.s32 %v981, %v972
    %v983 = vand.u32 %v960, 65535
    %v984 = vshrl.u32 %v960, 16
    %v985 = vand.u32 %v955, 65535
    %v986 = vshrl.u32 %v955, 16
    %v987 = vmul.u32 %v983, %v985
    %v988 = vmul.u32 %v983, %v986
    %v989 = vmul.u32 %v984, %v985
    %v990 = vmul.u32 %v984, %v986
    %v991 = vshll.u32 %v988, 16
    %v992 = vshrl.u32 %v988, 16
    %v993 = vshll.u32 %v989, 16
    %v994 = vshrl.u32 %v989, 16
    %vm995 = vc.u32 %v987, %v991
    %v996 = vsel %vm995, 1, 0
    %v997 = vadd.s32 %v987, %v991
    %v998 = vadd.s32 %v990, %v996
    %vm999 = vc.u32 %v997, %v993
    %v1000 = vsel %vm999, 1, 0
    %v1001 = vadd.s32 %v997, %v993
    %v1002 = vadd.s32 %v998, %v1000
    %v1003 = vadd.s32 %v1002, %v992
    %v1004 = vadd.s32 %v1003, %v994
    %v1005 = vmul.u32 %v960, %v951
    %v1006 = vadd.s32 %v982, %v1001
    %vm1007 = vc.u32 %v982, %v1001
    %v1008 = vadd.s32 %v1004, 1
    %v1009 = vsel %vm1007, %v1008, %v1004
    %v1010 = vadd.s32 %v1005, %v1009
    %v1011 = vadd.s32 %v1010, 536870912
    %v1012 = vshrl.u32 %v1011, 30
    %v1013 = vshll.u32 %v1012, 30
    %v1014 = vsub.s32 %v1010, %v1013
    %vm1015 = vcmp.lt.s32.totalorder %v1014, 0
    %v1016 = vsub.s32 0, %v1014
    %v1017 = vsel %vm1015, %v1016, %v1014
    %v1018 = vclz %v1017
    %v1019 = vsub.s32 %v1018, 2
    %vm1020 = vcmp.gt.s32.totalorder 0, %v1019
    %v1021 = vsel %vm1020, 0, %v1019
    %v1022 = vsub.s32 32, %v1021
    %v1023 = vshll.u32 %v1014, %v1021
    %v1024 = vshrl.u32 %v1006, %v1022
    %v1025 = vor.u32 %v1023, %v1024
    %v1026 = vsub.s32 4294967266, %v1021
    %v1027 = vadd.s32 %v1026, 127
    %v1028 = vshll.u32 %v1027, 23
    %v1029 = vor.u32 4788187, %v1028
    %v1030 = vand.u32 2147483647, %v1029
    %v1032 = vcvt.s32.f32 %v1025
    %v1033 = vmul.f32 %v1032, %v1030
    %v1034 = vxor.u32 %v1033, 2147483648
    %v1035 = vsel %vm914, %v1034, %v1033
    %v1036 = vsub.s32 4, %v1012
    %v1037 = vsel %vm914, %v1036, %v1012
    %v1038 = vsel %vm913, %v756, %v1035
    %v1039 = vsel %vm913, 0, %v1037
    %v1040 = vmul.f32 %v1038, %v1038
    %v1041 = vmul.f32 %v1040, -0.001358992
    %v1042 = vadd.f32 %v1041, 0.041655596
    %v1043 = vmul.f32 %v1040, %v1042
    %v1044 = vadd.f32 %v1043, -0.4999988
    %v1045 = vmul.f32 %v1040, %v1044
    %v1046 = vadd.f32 1.0, %v1045
    %v1047 = vmul.f32 %v1038, %v1038
    %v1048 = vmul.f32 %v1047, -0.00019511016
    %v1049 = vadd.f32 %v1048, 0.008332121
    %v1050 = vmul.f32 %v1047, %v1049
    %v1051 = vadd.f32 %v1050, -0.16666654
    %v1052 = vmul.f32 %v1047, %v1051
    %v1053 = vadd.f32 %v1052, 1.0
    %v1054 = vmul.f32 %v1053, %v1038
    %vm1055 = vweird.f32 %v756
    %v1056 = vadd.s32 %v1039, 3
    %v1057 = vand.u32 %v1056, 3
    %vm1058 = vcmp.lt.s32.totalorder %v1057, 2
    %vm1059 = vcmp.eq.s32.totalorder %v1057, 0
    %v1060 = vxor.u32 %v1054, 2147483648
    %v1061 = vsel %vm1059, %v1046, %v1060
    %vm1062 = vcmp.eq.s32.totalorder %v1057, 2
    %v1063 = vxor.u32 %v1046, 2147483648
    %v1064 = vsel %vm1062, %v1063, %v1054
    %v1065 = vsel %vm1058, %v1061, %v1064
    %v1066 = vsel %vm1055, nan, %v1065
    %v1067 = vpack.c.bf16 %v416, %v261
    %v1068 = vpack.c.bf16 %v740, %v585
    %v1069 = vpack.c.bf16 %v1066, %v911
    %v1070 = vld [vmem:[#allocation2] sm:$0xf]
    %v1071 = vld [vmem:[#allocation2 + $0x4] sm:$0xf]
    %v1072 = vld [vmem:[#allocation2 + $0x8] sm:$0xf]
    %v1073 = vld [vmem:[#allocation2 + $0xc] sm:$0xf]
    %v1074 = vld [vmem:[#allocation2 + $0x10] sm:$0xf]
    %v1075 = vld [vmem:[#allocation2 + $0x14] sm:$0xf]
    %v1076 = vld [vmem:[#allocation2 + $0x18] sm:$0xf]
    %v1077 = vld [vmem:[#allocation2 + $0x1c] sm:$0xf]
    %v1078 = vld [vmem:[#allocation2 + $0x20] sm:$0xf]
    %v1079 = vld [vmem:[#allocation2 + $0x24] sm:$0xf]
    %v1080 = vld [vmem:[#allocation2 + $0x28] sm:$0xf]
    %v1081 = vld [vmem:[#allocation2 + $0x2c] sm:$0xf]
    %v1082 = vld [vmem:[#allocation2 + $0x30] sm:$0xf]
    %v1083 = vld [vmem:[#allocation2 + $0x34] sm:$0xf]
    %v1084 = vld [vmem:[#allocation2 + $0x38] sm:$0xf]
    %v1085 = vld [vmem:[#allocation2 + $0x3c] sm:$0xf]
    %v1086 = vld [vmem:[#allocation2 + $0x40] sm:$0xf]
    %v1087 = vld [vmem:[#allocation2 + $0x44] sm:$0xf]
    %v1088 = vld [vmem:[#allocation2 + $0x48] sm:$0xf]
    %v1089 = vld [vmem:[#allocation2 + $0x4c] sm:$0xf]
    %v1090 = vld [vmem:[#allocation2 + $0x50] sm:$0xf]
    %v1091 = vld [vmem:[#allocation2 + $0x54] sm:$0xf]
    %v1092 = vld [vmem:[#allocation2 + $0x58] sm:$0xf]
    %v1093 = vld [vmem:[#allocation2 + $0x5c] sm:$0xf]
    %v1094 = vld [vmem:[#allocation2 + $0x60] sm:$0xf]
    %v1095 = vld [vmem:[#allocation2 + $0x64] sm:$0xf]
    %v1096 = vld [vmem:[#allocation2 + $0x68] sm:$0xf]
    %v1097 = vld [vmem:[#allocation2 + $0x6c] sm:$0xf]
    %v1098 = vld [vmem:[#allocation2 + $0x70] sm:$0xf]
    %v1099 = vld [vmem:[#allocation2 + $0x74] sm:$0xf]
    %v1100 = vld [vmem:[#allocation2 + $0x78] sm:$0xf]
    %v1101 = vld [vmem:[#allocation2 + $0x7c] sm:$0xf]
    %v1102 = vld [vmem:[#allocation2 + $0x80] sm:$0xf]
    %v1103 = vld [vmem:[#allocation2 + $0x84] sm:$0xf]
    %v1104 = vld [vmem:[#allocation2 + $0x88] sm:$0xf]
    %v1105 = vld [vmem:[#allocation2 + $0x8c] sm:$0xf]
    %v1106 = vld [vmem:[#allocation2 + $0x90] sm:$0xf]
    %v1107 = vld [vmem:[#allocation2 + $0x94] sm:$0xf]
    %v1108 = vld [vmem:[#allocation2 + $0x98] sm:$0xf]
    %v1109 = vld [vmem:[#allocation2 + $0x9c] sm:$0xf]
    %v1110 = vld [vmem:[#allocation2 + $0xa0] sm:$0xf]
    %v1111 = vld [vmem:[#allocation2 + $0xa4] sm:$0xf]
    %v1112 = vld [vmem:[#allocation2 + $0xa8] sm:$0xf]
    %v1113 = vld [vmem:[#allocation2 + $0xac] sm:$0xf]
    %v1114 = vld [vmem:[#allocation2 + $0xb0] sm:$0xf]
    %v1115 = vld [vmem:[#allocation2 + $0xb4] sm:$0xf]
    %v1116 = vld [vmem:[#allocation2 + $0xb8] sm:$0xf]
    %v1117 = vld [vmem:[#allocation2 + $0xbc] sm:$0xf]
    %v1118 = vld [vmem:[%s5] sm:$0x1]
    %v1120 = vperm.slane %v1118, 0
    %v1170 = vunpack.c.l.b16 %v1070
    %v1171 = vunpack.c.l.b16 %v1071
    %v1172 = vunpack.c.l.b16 %v1072
    %v1173 = vunpack.c.l.b16 %v1073
    %v1174 = vunpack.c.l.b16 %v1074
    %v1175 = vunpack.c.l.b16 %v1075
    %v1176 = vunpack.c.l.b16 %v1076
    %v1177 = vunpack.c.l.b16 %v1077
    %v1178 = vunpack.c.l.b16 %v1078
    %v1179 = vunpack.c.l.b16 %v1079
    %v1180 = vunpack.c.l.b16 %v1080
    %v1181 = vunpack.c.l.b16 %v1081
    %v1182 = vunpack.c.l.b16 %v1082
    %v1183 = vunpack.c.l.b16 %v1083
    %v1184 = vunpack.c.l.b16 %v1084
    %v1185 = vunpack.c.l.b16 %v1085
    %v1186 = vunpack.c.l.b16 %v1086
    %v1187 = vunpack.c.l.b16 %v1087
    %v1188 = vunpack.c.l.b16 %v1088
    %v1189 = vunpack.c.l.b16 %v1089
    %v1190 = vunpack.c.l.b16 %v1090
    %v1191 = vunpack.c.l.b16 %v1091
    %v1192 = vunpack.c.l.b16 %v1092
    %v1193 = vunpack.c.l.b16 %v1093
    %v1194 = vunpack.c.l.b16 %v1094
    %v1195 = vunpack.c.l.b16 %v1095
    %v1196 = vunpack.c.l.b16 %v1096
    %v1197 = vunpack.c.l.b16 %v1097
    %v1198 = vunpack.c.l.b16 %v1098
    %v1199 = vunpack.c.l.b16 %v1099
    %v1200 = vunpack.c.l.b16 %v1100
    %v1201 = vunpack.c.l.b16 %v1101
    %v1202 = vunpack.c.l.b16 %v1102
    %v1203 = vunpack.c.l.b16 %v1103
    %v1204 = vunpack.c.l.b16 %v1104
    %v1205 = vunpack.c.l.b16 %v1105
    %v1206 = vunpack.c.l.b16 %v1106
    %v1207 = vunpack.c.l.b16 %v1107
    %v1208 = vunpack.c.l.b16 %v1108
    %v1209 = vunpack.c.l.b16 %v1109
    %v1210 = vunpack.c.l.b16 %v1110
    %v1211 = vunpack.c.l.b16 %v1111
    %v1212 = vunpack.c.l.b16 %v1112
    %v1213 = vunpack.c.l.b16 %v1113
    %v1214 = vunpack.c.l.b16 %v1114
    %v1215 = vunpack.c.l.b16 %v1115
    %v1216 = vunpack.c.l.b16 %v1116
    %v1217 = vunpack.c.l.b16 %v1117
    %v1218 = vpack.c.b16 %v1171, %v1170
    %v1219 = vpack.c.b16 %v1173, %v1172
    %v1220 = vpack.c.b16 %v1175, %v1174
    %v1221 = vpack.c.b16 %v1177, %v1176
    %v1222 = vpack.c.b16 %v1179, %v1178
    %v1223 = vpack.c.b16 %v1181, %v1180
    %v1224 = vpack.c.b16 %v1183, %v1182
    %v1225 = vpack.c.b16 %v1185, %v1184
    %v1226 = vpack.c.b16 %v1187, %v1186
    %v1227 = vpack.c.b16 %v1189, %v1188
    %v1228 = vpack.c.b16 %v1191, %v1190
    %v1229 = vpack.c.b16 %v1193, %v1192
    %v1230 = vpack.c.b16 %v1195, %v1194
    %v1231 = vpack.c.b16 %v1197, %v1196
    %v1232 = vpack.c.b16 %v1199, %v1198
    %v1233 = vpack.c.b16 %v1201, %v1200
    %v1234 = vpack.c.b16 %v1203, %v1202
    %v1235 = vpack.c.b16 %v1205, %v1204
    %v1236 = vpack.c.b16 %v1207, %v1206
    %v1237 = vpack.c.b16 %v1209, %v1208
    %v1238 = vpack.c.b16 %v1211, %v1210
    %v1239 = vpack.c.b16 %v1213, %v1212
    %v1240 = vpack.c.b16 %v1215, %v1214
    %v1241 = vpack.c.b16 %v1217, %v1216
    %1266 = vmatpush.bf16.msra.mxu0 %v1225
    %1267 = vmatpush.bf16.msra.mxu0 %v1224
    %1268 = vmatpush.bf16.msra.mxu0 %v1223
    %1269 = vmatpush.bf16.msra.mxu0 %v1222
    %1270 = vmatpush.bf16.msra.mxu0 %v1221
    %1271 = vmatpush.bf16.msra.mxu0 %v1220
    %1272 = vmatpush.bf16.msra.mxu0 %v1219
    %1273 = vmatpush.bf16.msra.mxu0 %v1218
    %1274 = vmatmul.bf16.gmra.mxu0 %v1067
    %v1275 = vpop.f32.mrf.mxu0
    %v1276 = vadd.f32 %v1120, %v1275
    %v1277 = vpop.f32.mrf.mxu0
    %v1278 = vadd.f32 %v1120, %v1277
    %1279 = vdwg.mxu0
    %1280 = vmatpush.bf16.msra.mxu0 %v1233
    %1281 = vmatpush.bf16.msra.mxu0 %v1232
    %1282 = vmatpush.bf16.msra.mxu0 %v1231
    %1283 = vmatpush.bf16.msra.mxu0 %v1230
    %1284 = vmatpush.bf16.msra.mxu0 %v1229
    %1285 = vmatpush.bf16.msra.mxu0 %v1228
    %1286 = vmatpush.bf16.msra.mxu0 %v1227
    %1287 = vmatpush.bf16.msra.mxu0 %v1226
    %1288 = vmatmul.bf16.gmra.mxu0 %v1068
    %v1289 = vpop.f32.mrf.mxu0
    %v1290 = vadd.f32 %v1276, %v1289
    %v1291 = vpop.f32.mrf.mxu0
    %v1292 = vadd.f32 %v1278, %v1291
    %1293 = vdwg.mxu0
    %1294 = vmatpush.bf16.msra.mxu0 %v1241
    %1295 = vmatpush.bf16.msra.mxu0 %v1240
    %1296 = vmatpush.bf16.msra.mxu0 %v1239
    %1297 = vmatpush.bf16.msra.mxu0 %v1238
    %1298 = vmatpush.bf16.msra.mxu0 %v1237
    %1299 = vmatpush.bf16.msra.mxu0 %v1236
    %1300 = vmatpush.bf16.msra.mxu0 %v1235
    %1301 = vmatpush.bf16.msra.mxu0 %v1234
    %1302 = vmatmul.bf16.gmra.mxu0 %v1069
    %v1303 = vpop.f32.mrf.mxu0
    %v1304 = vadd.f32 %v1290, %v1303
    %v1305 = vpop.f32.mrf.mxu0
    %v1306 = vadd.f32 %v1292, %v1305
    %1307 = vdwg.mxu0
    %v1308 = vmul.f32 %v1304, 0.5
    %v1309 = vmul.f32 %v1306, 0.5
    %v1310 = vmul.f32 %v1304, %v1304
    %v1311 = vmul.f32 %v1306, %v1306
    %v1312 = vmul.f32 %v1310, 0.035677407
    %v1313 = vmul.f32 %v1311, 0.035677407
    %v1314 = vadd.f32 %v1312, 0.7978846
    %v1315 = vadd.f32 %v1313, 0.7978846
    %v1316 = vmul.f32 %v1304, %v1314
    %v1317 = vmul.f32 %v1306, %v1315
    %v1318 = vtanh.pop %v1316
    %v1319 = vtanh.pop %v1317
    %v1320 = vmul.f32 %v1308, %v1318
    %v1321 = vmul.f32 %v1309, %v1319
    %v1322 = vadd.f32 %v1308, %v1320
    %v1323 = vadd.f32 %v1309, %v1321
    %v1324 = vpack.c.bf16 %v1323, %v1322
    %v1325 = vld [vmem:[#allocation5] sm:$0xf]
    %v1326 = vld [vmem:[#allocation5 + $0x4] sm:$0xf]
    %v1327 = vld [vmem:[#allocation5 + $0x8] sm:$0xf]
    %v1328 = vld [vmem:[#allocation5 + $0xc] sm:$0xf]
    %v1329 = vld [vmem:[#allocation5 + $0x10] sm:$0xf]
    %v1330 = vld [vmem:[#allocation5 + $0x14] sm:$0xf]
    %v1331 = vld [vmem:[#allocation5 + $0x18] sm:$0xf]
    %v1332 = vld [vmem:[#allocation5 + $0x1c] sm:$0xf]
    %v1333 = vld [vmem:[#allocation5 + $0x20] sm:$0xf]
    %v1334 = vld [vmem:[#allocation5 + $0x24] sm:$0xf]
    %v1335 = vld [vmem:[#allocation5 + $0x28] sm:$0xf]
    %v1336 = vld [vmem:[#allocation5 + $0x2c] sm:$0xf]
    %v1337 = vld [vmem:[#allocation5 + $0x30] sm:$0xf]
    %v1338 = vld [vmem:[#allocation5 + $0x34] sm:$0xf]
    %v1339 = vld [vmem:[#allocation5 + $0x38] sm:$0xf]
    %v1340 = vld [vmem:[#allocation5 + $0x3c] sm:$0xf]
    %v1341 = vld [vmem:[%s7] sm:$0x1]
    %v1343 = vperm.slane %v1341, 0
    %v1361 = vunpack.c.l.b16 %v1325
    %v1362 = vunpack.c.l.b16 %v1326
    %v1363 = vunpack.c.l.b16 %v1327
    %v1364 = vunpack.c.l.b16 %v1328
    %v1365 = vunpack.c.l.b16 %v1329
    %v1366 = vunpack.c.l.b16 %v1330
    %v1367 = vunpack.c.l.b16 %v1331
    %v1368 = vunpack.c.l.b16 %v1332
    %v1369 = vunpack.c.l.b16 %v1333
    %v1370 = vunpack.c.l.b16 %v1334
    %v1371 = vunpack.c.l.b16 %v1335
    %v1372 = vunpack.c.l.b16 %v1336
    %v1373 = vunpack.c.l.b16 %v1337
    %v1374 = vunpack.c.l.b16 %v1338
    %v1375 = vunpack.c.l.b16 %v1339
    %v1376 = vunpack.c.l.b16 %v1340
    %v1377 = vpack.c.b16 %v1362, %v1361
    %v1378 = vpack.c.b16 %v1364, %v1363
    %v1379 = vpack.c.b16 %v1366, %v1365
    %v1380 = vpack.c.b16 %v1368, %v1367
    %v1381 = vpack.c.b16 %v1370, %v1369
    %v1382 = vpack.c.b16 %v1372, %v1371
    %v1383 = vpack.c.b16 %v1374, %v1373
    %v1384 = vpack.c.b16 %v1376, %v1375
    %1393 = vmatpush.bf16.msra.mxu0 %v1384
    %1394 = vmatpush.bf16.msra.mxu0 %v1383
    %1395 = vmatpush.bf16.msra.mxu0 %v1382
    %1396 = vmatpush.bf16.msra.mxu0 %v1381
    %1397 = vmatpush.bf16.msra.mxu0 %v1380
    %1398 = vmatpush.bf16.msra.mxu0 %v1379
    %1399 = vmatpush.bf16.msra.mxu0 %v1378
    %1400 = vmatpush.bf16.msra.mxu0 %v1377
    %1401 = vmatmul.bf16.gmra.mxu0 %v1324
    %v1402 = vpop.f32.mrf.mxu0
    %v1403 = vadd.f32 %v1343, %v1402
    %v1404 = vpop.f32.mrf.mxu0
    %v1405 = vadd.f32 %v1343, %v1404
    %1406 = vdwg.mxu0
    %v1407 = vmul.f32 %v1403, 0.5
    %v1408 = vmul.f32 %v1405, 0.5
    %v1409 = vmul.f32 %v1403, 0.851
    %v1410 = vmul.f32 %v1405, 0.851
    %v1411 = vtanh.pop %v1409
    %v1412 = vtanh.pop %v1410
    %v1413 = vmul.f32 %v1407, %v1411
    %v1414 = vmul.f32 %v1408, %v1412
    %v1415 = vadd.f32 %v1407, %v1413
    %v1416 = vadd.f32 %v1408, %v1414
    %v1417 = vadd.f32 %v1322, %v1415
    %v1418 = vadd.f32 %v1323, %v1416
    %v1419 = vpack.c.bf16 %v1418, %v1417
    %s1420 = scalar_lea.vmem [#allocation5], 64
    %v1421 = vld [vmem:[%s1420] sm:$0xf]
    %v1422 = vld [vmem:[%s1420 + $0x4] sm:$0xf]
    %v1423 = vld [vmem:[%s1420 + $0x8] sm:$0xf]
    %v1424 = vld [vmem:[%s1420 + $0xc] sm:$0xf]
    %v1425 = vld [vmem:[%s1420 + $0x10] sm:$0xf]
    %v1426 = vld [vmem:[%s1420 + $0x14] sm:$0xf]
    %v1427 = vld [vmem:[%s1420 + $0x18] sm:$0xf]
    %v1428 = vld [vmem:[%s1420 + $0x1c] sm:$0xf]
    %v1429 = vld [vmem:[%s1420 + $0x20] sm:$0xf]
    %v1430 = vld [vmem:[%s1420 + $0x24] sm:$0xf]
    %v1431 = vld [vmem:[%s1420 + $0x28] sm:$0xf]
    %v1432 = vld [vmem:[%s1420 + $0x2c] sm:$0xf]
    %v1433 = vld [vmem:[%s1420 + $0x30] sm:$0xf]
    %v1434 = vld [vmem:[%s1420 + $0x34] sm:$0xf]
    %v1435 = vld [vmem:[%s1420 + $0x38] sm:$0xf]
    %v1436 = vld [vmem:[%s1420 + $0x3c] sm:$0xf]
    %s1437 = scalar_lea.vmem %s7, 1
    %v1438 = vld [vmem:[%s1437] sm:$0x1]
    %v1440 = vperm.slane %v1438, 0
    %v1458 = vunpack.c.l.b16 %v1421
    %v1459 = vunpack.c.l.b16 %v1422
    %v1460 = vunpack.c.l.b16 %v1423
    %v1461 = vunpack.c.l.b16 %v1424
    %v1462 = vunpack.c.l.b16 %v1425
    %v1463 = vunpack.c.l.b16 %v1426
    %v1464 = vunpack.c.l.b16 %v1427
    %v1465 = vunpack.c.l.b16 %v1428
    %v1466 = vunpack.c.l.b16 %v1429
    %v1467 = vunpack.c.l.b16 %v1430
    %v1468 = vunpack.c.l.b16 %v1431
    %v1469 = vunpack.c.l.b16 %v1432
    %v1470 = vunpack.c.l.b16 %v1433
    %v1471 = vunpack.c.l.b16 %v1434
    %v1472 = vunpack.c.l.b16 %v1435
    %v1473 = vunpack.c.l.b16 %v1436
    %v1474 = vpack.c.b16 %v1459, %v1458
    %v1475 = vpack.c.b16 %v1461, %v1460
    %v1476 = vpack.c.b16 %v1463, %v1462
    %v1477 = vpack.c.b16 %v1465, %v1464
    %v1478 = vpack.c.b16 %v1467, %v1466
    %v1479 = vpack.c.b16 %v1469, %v1468
    %v1480 = vpack.c.b16 %v1471, %v1470
    %v1481 = vpack.c.b16 %v1473, %v1472
    %1490 = vmatpush.bf16.msra.mxu0 %v1481
    %1491 = vmatpush.bf16.msra.mxu0 %v1480
    %1492 = vmatpush.bf16.msra.mxu0 %v1479
    %1493 = vmatpush.bf16.msra.mxu0 %v1478
    %1494 = vmatpush.bf16.msra.mxu0 %v1477
    %1495 = vmatpush.bf16.msra.mxu0 %v1476
    %1496 = vmatpush.bf16.msra.mxu0 %v1475
    %1497 = vmatpush.bf16.msra.mxu0 %v1474
    %1498 = vmatmul.bf16.gmra.mxu0 %v1419
    %v1499 = vpop.f32.mrf.mxu0
    %v1500 = vadd.f32 %v1440, %v1499
    %v1501 = vpop.f32.mrf.mxu0
    %v1502 = vadd.f32 %v1440, %v1501
    %1503 = vdwg.mxu0
    %v1504 = vmul.f32 %v1500, 0.5
    %v1505 = vmul.f32 %v1502, 0.5
    %v1506 = vmul.f32 %v1500, 0.851
    %v1507 = vmul.f32 %v1502, 0.851
    %v1508 = vtanh.pop %v1506
    %v1509 = vtanh.pop %v1507
    %v1510 = vmul.f32 %v1504, %v1508
    %v1511 = vmul.f32 %v1505, %v1509
    %v1512 = vadd.f32 %v1504, %v1510
    %v1513 = vadd.f32 %v1505, %v1511
    %v1514 = vadd.f32 %v1417, %v1512
    %v1515 = vadd.f32 %v1418, %v1513
    %v1516 = vpack.c.bf16 %v1515, %v1514
    %s1517 = scalar_lea.vmem [#allocation5], 128
    %v1518 = vld [vmem:[%s1517] sm:$0xf]
    %v1519 = vld [vmem:[%s1517 + $0x4] sm:$0xf]
    %v1520 = vld [vmem:[%s1517 + $0x8] sm:$0xf]
    %v1521 = vld [vmem:[%s1517 + $0xc] sm:$0xf]
    %v1522 = vld [vmem:[%s1517 + $0x10] sm:$0xf]
    %v1523 = vld [vmem:[%s1517 + $0x14] sm:$0xf]
    %v1524 = vld [vmem:[%s1517 + $0x18] sm:$0xf]
    %v1525 = vld [vmem:[%s1517 + $0x1c] sm:$0xf]
    %v1526 = vld [vmem:[%s1517 + $0x20] sm:$0xf]
    %v1527 = vld [vmem:[%s1517 + $0x24] sm:$0xf]
    %v1528 = vld [vmem:[%s1517 + $0x28] sm:$0xf]
    %v1529 = vld [vmem:[%s1517 + $0x2c] sm:$0xf]
    %v1530 = vld [vmem:[%s1517 + $0x30] sm:$0xf]
    %v1531 = vld [vmem:[%s1517 + $0x34] sm:$0xf]
    %v1532 = vld [vmem:[%s1517 + $0x38] sm:$0xf]
    %v1533 = vld [vmem:[%s1517 + $0x3c] sm:$0xf]
    %s1534 = scalar_lea.vmem %s7, 2
    %v1535 = vld [vmem:[%s1534] sm:$0x1]
    %v1537 = vperm.slane %v1535, 0
    %v1555 = vunpack.c.l.b16 %v1518
    %v1556 = vunpack.c.l.b16 %v1519
    %v1557 = vunpack.c.l.b16 %v1520
    %v1558 = vunpack.c.l.b16 %v1521
    %v1559 = vunpack.c.l.b16 %v1522
    %v1560 = vunpack.c.l.b16 %v1523
    %v1561 = vunpack.c.l.b16 %v1524
    %v1562 = vunpack.c.l.b16 %v1525
    %v1563 = vunpack.c.l.b16 %v1526
    %v1564 = vunpack.c.l.b16 %v1527
    %v1565 = vunpack.c.l.b16 %v1528
    %v1566 = vunpack.c.l.b16 %v1529
    %v1567 = vunpack.c.l.b16 %v1530
    %v1568 = vunpack.c.l.b16 %v1531
    %v1569 = vunpack.c.l.b16 %v1532
    %v1570 = vunpack.c.l.b16 %v1533
    %v1571 = vpack.c.b16 %v1556, %v1555
    %v1572 = vpack.c.b16 %v1558, %v1557
    %v1573 = vpack.c.b16 %v1560, %v1559
    %v1574 = vpack.c.b16 %v1562, %v1561
    %v1575 = vpack.c.b16 %v1564, %v1563
    %v1576 = vpack.c.b16 %v1566, %v1565
    %v1577 = vpack.c.b16 %v1568, %v1567
    %v1578 = vpack.c.b16 %v1570, %v1569
    %1587 = vmatpush.bf16.msra.mxu0 %v1578
    %1588 = vmatpush.bf16.msra.mxu0 %v1577
    %1589 = vmatpush.bf16.msra.mxu0 %v1576
    %1590 = vmatpush.bf16.msra.mxu0 %v1575
    %1591 = vmatpush.bf16.msra.mxu0 %v1574
    %1592 = vmatpush.bf16.msra.mxu0 %v1573
    %1593 = vmatpush.bf16.msra.mxu0 %v1572
    %1594 = vmatpush.bf16.msra.mxu0 %v1571
    %1595 = vmatmul.bf16.gmra.mxu0 %v1516
    %v1596 = vpop.f32.mrf.mxu0
    %v1597 = vadd.f32 %v1537, %v1596
    %v1598 = vpop.f32.mrf.mxu0
    %v1599 = vadd.f32 %v1537, %v1598
    %1600 = vdwg.mxu0
    %v1601 = vmul.f32 %v1597, 0.5
    %v1602 = vmul.f32 %v1599, 0.5
    %v1603 = vmul.f32 %v1597, 0.851
    %v1604 = vmul.f32 %v1599, 0.851
    %v1605 = vtanh.pop %v1603
    %v1606 = vtanh.pop %v1604
    %v1607 = vmul.f32 %v1601, %v1605
    %v1608 = vmul.f32 %v1602, %v1606
    %v1609 = vadd.f32 %v1601, %v1607
    %v1610 = vadd.f32 %v1602, %v1608
    %v1611 = vadd.f32 %v1514, %v1609
    %v1612 = vadd.f32 %v1515, %v1610
    %v1613 = vpack.c.bf16 %v1612, %v1611
    %v1614 = vld [vmem:[#allocation7] sm:$0xf]
    %v1615 = vld [vmem:[#allocation7 + $0x4] sm:$0xf]
    %v1616 = vld [vmem:[#allocation7 + $0x8] sm:$0xf]
    %v1617 = vld [vmem:[#allocation7 + $0xc] sm:$0xf]
    %v1618 = vld [vmem:[#allocation7 + $0x10] sm:$0xf]
    %v1619 = vld [vmem:[#allocation7 + $0x14] sm:$0xf]
    %v1620 = vld [vmem:[#allocation7 + $0x18] sm:$0xf]
    %v1621 = vld [vmem:[#allocation7 + $0x1c] sm:$0xf]
    %v1622 = vld [vmem:[#allocation7 + $0x20] sm:$0xf]
    %v1623 = vld [vmem:[#allocation7 + $0x24] sm:$0xf]
    %v1624 = vld [vmem:[#allocation7 + $0x28] sm:$0xf]
    %v1625 = vld [vmem:[#allocation7 + $0x2c] sm:$0xf]
    %v1626 = vld [vmem:[#allocation7 + $0x30] sm:$0xf]
    %v1627 = vld [vmem:[#allocation7 + $0x34] sm:$0xf]
    %v1628 = vld [vmem:[#allocation7 + $0x38] sm:$0xf]
    %v1629 = vld [vmem:[#allocation7 + $0x3c] sm:$0xf]
    %v1630 = vld [vmem:[%s9] sm:$0x1]
    %v1632 = vperm.slane %v1630, 0
    %v1650 = vunpack.c.l.b16 %v1614
    %v1651 = vunpack.c.l.b16 %v1615
    %v1652 = vunpack.c.l.b16 %v1616
    %v1653 = vunpack.c.l.b16 %v1617
    %v1654 = vunpack.c.l.b16 %v1618
    %v1655 = vunpack.c.l.b16 %v1619
    %v1656 = vunpack.c.l.b16 %v1620
    %v1657 = vunpack.c.l.b16 %v1621
    %v1658 = vunpack.c.l.b16 %v1622
    %v1659 = vunpack.c.l.b16 %v1623
    %v1660 = vunpack.c.l.b16 %v1624
    %v1661 = vunpack.c.l.b16 %v1625
    %v1662 = vunpack.c.l.b16 %v1626
    %v1663 = vunpack.c.l.b16 %v1627
    %v1664 = vunpack.c.l.b16 %v1628
    %v1665 = vunpack.c.l.b16 %v1629
    %v1666 = vpack.c.b16 %v1651, %v1650
    %v1667 = vpack.c.b16 %v1653, %v1652
    %v1668 = vpack.c.b16 %v1655, %v1654
    %v1669 = vpack.c.b16 %v1657, %v1656
    %v1670 = vpack.c.b16 %v1659, %v1658
    %v1671 = vpack.c.b16 %v1661, %v1660
    %v1672 = vpack.c.b16 %v1663, %v1662
    %v1673 = vpack.c.b16 %v1665, %v1664
    %1682 = vmatpush.bf16.msra.mxu0 %v1673
    %1683 = vmatpush.bf16.msra.mxu0 %v1672
    %1684 = vmatpush.bf16.msra.mxu0 %v1671
    %1685 = vmatpush.bf16.msra.mxu0 %v1670
    %1686 = vmatpush.bf16.msra.mxu0 %v1669
    %1687 = vmatpush.bf16.msra.mxu0 %v1668
    %1688 = vmatpush.bf16.msra.mxu0 %v1667
    %1689 = vmatpush.bf16.msra.mxu0 %v1666
    %1690 = vmatmul.bf16.gmra.mxu0 %v1613
    %v1691 = vpop.f32.mrf.mxu0
    %v1692 = vadd.f32 %v1632, %v1691
    %v1693 = vpop.f32.mrf.mxu0
    %v1694 = vadd.f32 %v1632, %v1693
    %1695 = vdwg.mxu0
    %v1696 = vpack.c.bf16 %v1692, %v1692
    %v1697 = vpack.c.bf16 %v1694, %v1694
    %1698 = vst [vmem:[#allocation8] sm:$0xf] %v1696
    %1699 = vst [vmem:[#allocation8 + $0x4] sm:$0xf] %v1697
    // Predicated region
    $region54: #{tpu_custom_call.1} parent=1 // pred_check
      _
    $region55: #{tpu_custom_call.1} parent=1 // pred_check_branch
      %1701 = sbr.rel (0) target = $region57
    $region56: #{tpu_custom_call.1} parent=1 // pred_region
      %1703 = vsyncadd [#allocation4], 0
      %s1704 = sshll.u32 [#allocation8], 4
      %s1705 = int_to_ptr.vmem [resolvable:$true] %s1704
      %s1706 = sshll.u32 %s10, 4
      %s1707 = int_to_ptr.hbm [resolvable:$true] %s1706
      %1712 = dma.vmem_to_hbm [thread:$0]  %s1705, 128, %s1707, [#allocation4], 64, 64, 4
    $region57: #{tpu_custom_call.1} parent=1 // pred_fallthru
      _
    // Predicated region
    $region58: #{tpu_custom_call.1} parent=1 // pred_check
      _
    $region59: #{tpu_custom_call.1} parent=1 // pred_check_branch
      %1714 = sbr.rel (0) target = $region61
    $region60: #{tpu_custom_call.1} parent=1 // pred_region
      %1716 = dma.done [#allocation4], 128
    $region61: #{tpu_custom_call.1} parent=1 // pred_fallthru
      _
    %1717 = vsyncpa [#allocation3], 1
    %1718 = vsyncpa [#allocation6], 1
    %1719 = vsyncpa [#allocation4], 1

</llo_original>
